<compile_context>
chip_gen: v7x
topology: tpu7x:2x2x1
jax: 0.10.0
libtpu: 0.0.40
codegen_flags: <defaults>
</compile_context>

<pallas_src>
import jax
import jax.numpy as jnp
from jax.experimental import pallas as pl
from jax.experimental.pallas import tpu as pltpu

# Problem sizes (small, consistent with the module's forward).
N = 2      # batch
C = 4      # input channels
H = 16     # height
W = 16     # width
D = 32     # descriptor dimension (conv output channels)
KH = KW = 3


def descriptor_loss_kernel(patches_ref, w_ref, b_ref, pool_ref, out_ref):
    """Single invocation (no grid).

    patches_ref: (2*N*H*W, KH*KW*C)  im2col rows for [img batch, timg batch]
    w_ref:       (KH*KW*C, D)        conv weights
    b_ref:       (1, D)              conv bias
    pool_ref:    (N, 2*N*H*W)        signed average-pool matrix:
                                     +1/(H*W) over img rows of batch n,
                                     -1/(H*W) over trans_img rows of batch n
    out_ref:     (1,) SMEM scalar    MSE loss
    """
    # Conv as one MXU matmul over all taps / both images / the whole batch.
    y = jnp.dot(patches_ref[...], w_ref[...],
                preferred_element_type=jnp.float32)          # (2NHW, D)
    y = jnp.maximum(y + b_ref[...], 0.0)                      # bias + ReLU

    # Fused global-average-pool AND descriptor difference on the MXU:
    # diff[n] = mean_pool(relu(conv(img_n))) - mean_pool(relu(conv(timg_n)))
    diff = jnp.dot(pool_ref[...], y,
                   preferred_element_type=jnp.float32)        # (N, D)

    # MSELoss: mean over all N*D descriptor elements.
    out_ref[0] = jnp.sum(diff * diff) * (1.0 / (N * D))


def _im2col(x_padded_nhwc):
    """(N, H+2, W+2, C) zero-padded NHWC -> (N*H*W, KH*KW*C) patch matrix."""
    n = x_padded_nhwc.shape[0]
    taps = []
    for di in range(KH):
        for dj in range(KW):
            taps.append(x_padded_nhwc[:, di:di + H, dj:dj + W, :])
    patches = jnp.stack(taps, axis=3)            # (N, H, W, 9, C)
    return patches.reshape(n * H * W, KH * KW * C)


def descriptor_loss(img_nchw, trans_img_nchw, conv_w, conv_b):
    """img/trans_img: (N, C, H, W) float32 (PyTorch layout).
    conv_w: (KH, KW, C, D), conv_b: (D,)."""
    n = img_nchw.shape[0]
    hw = H * W

    def prep(x):
        x = jnp.transpose(x, (0, 2, 3, 1))                     # NCHW -> NHWC
        x = jnp.pad(x, ((0, 0), (1, 1), (1, 1), (0, 0)))       # spatial pad=1
        return _im2col(x)                                      # (N*H*W, 9*C)

    # Both images, whole batch, in one lane-dense operand.
    patches = jnp.concatenate([prep(img_nchw), prep(trans_img_nchw)],
                              axis=0).astype(jnp.float32)      # (2NHW, 9C)

    w = conv_w.reshape(KH * KW * C, D).astype(jnp.float32)     # (9C, D)
    bias = conv_b.reshape(1, D).astype(jnp.float32)            # (1, D)

    # Signed block-diagonal pooling matrix: pool @ relu(conv) gives the
    # per-batch descriptor difference directly (pool and diff are linear,
    # applied after the ReLU).
    sign = jnp.concatenate([jnp.eye(n, dtype=jnp.float32),
                            -jnp.eye(n, dtype=jnp.float32)], axis=1)  # (N, 2N)
    pool = jnp.kron(sign, jnp.ones((1, hw), jnp.float32)) * (1.0 / hw)

    out = pl.pallas_call(
        descriptor_loss_kernel,
        out_shape=jax.ShapeDtypeStruct((1,), jnp.float32),
        in_specs=[
            pl.BlockSpec(memory_space=pltpu.MemorySpace.VMEM),  # patches
            pl.BlockSpec(memory_space=pltpu.MemorySpace.VMEM),  # weights
            pl.BlockSpec(memory_space=pltpu.MemorySpace.VMEM),  # bias
            pl.BlockSpec(memory_space=pltpu.MemorySpace.VMEM),  # pool matrix
        ],
        out_specs=pl.BlockSpec(memory_space=pltpu.MemorySpace.SMEM),
    )(patches, w, bias, pool)
    return out[0]


def _reference_loss(img_nchw, trans_img_nchw, conv_w, conv_b):
    """Plain-JAX reference of the same math (for self-verification)."""
    def describe(x_nchw):
        x = jnp.transpose(x_nchw, (0, 2, 3, 1))
        x = jnp.pad(x, ((0, 0), (1, 1), (1, 1), (0, 0)))
        acc = jnp.zeros((x_nchw.shape[0], H, W, D), jnp.float32)
        for di in range(KH):
            for dj in range(KW):
                patch = x[:, di:di + H, dj:dj + W, :]
                acc = acc + jnp.einsum("nhwc,cd->nhwd", patch, conv_w[di, dj])
        y = jnp.maximum(acc + conv_b, 0.0)
        return jnp.mean(y, axis=(1, 2))                        # (N, D)

    d1 = describe(img_nchw)
    d2 = describe(trans_img_nchw)
    return jnp.mean((d1 - d2) ** 2)


if __name__ == "__main__":
    key = jax.random.PRNGKey(0)
    k_img, k_timg, k_w, k_b = jax.random.split(key, 4)

    img = jax.random.normal(k_img, (N, C, H, W), dtype=jnp.float32)
    trans_img = img + 0.1 * jax.random.normal(k_timg, (N, C, H, W),
                                              dtype=jnp.float32)

    # Deterministic "description_generator" parameters (synthetic init).
    conv_w = 0.1 * jax.random.normal(k_w, (KH, KW, C, D), dtype=jnp.float32)
    conv_b = 0.01 * jax.random.normal(k_b, (D,), dtype=jnp.float32)

    loss = descriptor_loss(img, trans_img, conv_w, conv_b)
    loss = jax.block_until_ready(loss)

    ref = _reference_loss(img, trans_img, conv_w, conv_b)
    assert jnp.allclose(loss, ref, rtol=1e-4, atol=1e-6), (loss, ref)

    print("KERNEL_OK")
</pallas_src>

<mosaic_0001>
module attributes {stable_mosaic.version = 11 : i64} {
  func.func @descriptor_loss_kernel(%arg0: memref<1024x36xf32, #tpu.memory_space<vmem>>, %arg1: memref<36x32xf32, #tpu.memory_space<vmem>>, %arg2: memref<1x32xf32, #tpu.memory_space<vmem>>, %arg3: memref<2x1024xf32, #tpu.memory_space<vmem>>, %arg4: memref<1xf32, #tpu.memory_space<smem>>) attributes {dimension_semantics = [], scalar_prefetch = 0 : i64, scratch_operands = 0 : i64, tpu.core_type = #tpu.core_type<tc>} {
    %c0 = arith.constant 0 : index
    %c0_0 = arith.constant 0 : index
    %0 = vector.load %arg0[%c0, %c0_0] : memref<1024x36xf32, #tpu.memory_space<vmem>>, vector<1024x36xf32>
    %c0_1 = arith.constant 0 : index
    %c0_2 = arith.constant 0 : index
    %1 = vector.load %arg1[%c0_1, %c0_2] : memref<36x32xf32, #tpu.memory_space<vmem>>, vector<36x32xf32>
    %cst = arith.constant dense<0.000000e+00> : vector<1024x32xf32>
    %2 = tpu.matmul %0, %1, %cst {dimension_numbers = #tpu.dot_dimension_numbers<[1], [0], [0], [1], [0, 0, 1, 1], [], []>} : vector<1024x36xf32>, vector<36x32xf32>, vector<1024x32xf32> -> vector<1024x32xf32>
    %c0_3 = arith.constant 0 : index
    %c0_4 = arith.constant 0 : index
    %3 = vector.load %arg2[%c0_3, %c0_4] : memref<1x32xf32, #tpu.memory_space<vmem>>, vector<1x32xf32>
    %4 = vector.broadcast %3 : vector<1x32xf32> to vector<1024x32xf32>
    %5 = arith.addf %2, %4 : vector<1024x32xf32>
    %cst_5 = arith.constant 0.000000e+00 : f32
    %6 = vector.broadcast %cst_5 : f32 to vector<1024x32xf32>
    %7 = arith.maximumf %5, %6 : vector<1024x32xf32>
    %c0_6 = arith.constant 0 : index
    %c0_7 = arith.constant 0 : index
    %8 = vector.load %arg3[%c0_6, %c0_7] : memref<2x1024xf32, #tpu.memory_space<vmem>>, vector<2x1024xf32>
    %cst_8 = arith.constant dense<0.000000e+00> : vector<2x32xf32>
    %9 = tpu.matmul %8, %7, %cst_8 {dimension_numbers = #tpu.dot_dimension_numbers<[1], [0], [0], [1], [0, 0, 1, 1], [], []>} : vector<2x1024xf32>, vector<1024x32xf32>, vector<2x32xf32> -> vector<2x32xf32>
    %10 = arith.mulf %9, %9 : vector<2x32xf32>
    %11 = vector.shape_cast %10 : vector<2x32xf32> to vector<1x2x32xf32>
    %cst_9 = arith.constant dense<0.000000e+00> : vector<1xf32>
    %12 = vector.multi_reduction <add>, %11, %cst_9 [1, 2] : vector<1x2x32xf32> to vector<1xf32>
    %13 = vector.shape_cast %12 : vector<1xf32> to vector<1x1x1xf32>
    %14 = vector.extract %13[0, 0, 0] : f32 from vector<1x1x1xf32>
    %cst_10 = arith.constant 1.562500e-02 : f32
    %15 = arith.mulf %14, %cst_10 : f32
    %c0_11 = arith.constant 0 : index
    %16 = memref.load %arg4[%c0_11] : memref<1xf32, #tpu.memory_space<smem>>
    memref.store %15, %arg4[%c0_11] : memref<1xf32, #tpu.memory_space<smem>>
    return
  }
}

</mosaic_0001>

<llo_original>
// kernel: tpu_custom_call.1
$region0: #{tpu_custom_call.1}
  #allocation0 [shape = 'u32[]', space=smem, size = 0x4, offset = 0x4, fixed_abs, tag = 'smem constant byte address 0x4 - core index']
  #allocation1 [shape = 'u32[144,128]{1,0:T(1,128)}', space=vmem, size = 0x12000, scoped, tag = 'internal scratch']
  %s0 = inlined_call_operand.vmem [shape: f32[1024,36], index: 0, kind: input, shape index: {}]
  %s1 = inlined_call_operand.vmem [shape: f32[36,32], index: 1, kind: input, shape index: {}]
  %s2 = inlined_call_operand.vmem [shape: f32[1,32], index: 2, kind: input, shape index: {}]
  %s3 = inlined_call_operand.vmem [shape: f32[2,1024], index: 3, kind: input, shape index: {}]
  %s4 = inlined_call_operand.hbm [shape: f32[1], index: 4, kind: output, shape index: {}]
  %s5 = sld [smem:[#allocation0]]
  $region26: #{tpu_custom_call.1} parent=0
    _
  %s7 = ssub.s32 1, %s5
  %s8 = scalar_select 0, %s7, %s5
  $region1: #{tpu_custom_call.1} parent=0
    #allocation2 [shape = 'u8[512]{0}', space=smem, size = 0x200, scoped, tag = 'output window, operand 0, single buffered']
    #allocation3 [shape = 's32[1]{0}', space=sflag, size = 0x4, scoped, tag = 'scoped memory for tpu_custom_call.1']
    %9 = vsyncpa [#allocation3], 0
    // Predicated region
    $region2: #{tpu_custom_call.1} parent=1 // pred_check
      _
    $region3: #{tpu_custom_call.1} parent=1 // pred_check_branch
      %11 = sbr.rel (0) target = $region5
    $region4: #{tpu_custom_call.1} parent=1 // pred_region
      _
    $region5: #{tpu_custom_call.1} parent=1 // pred_fallthru
      _
    // Predicated region
    $region6: #{tpu_custom_call.1} parent=1 // pred_check
      _
    $region7: #{tpu_custom_call.1} parent=1 // pred_check_branch
      %13 = sbr.rel (0) target = $region9
    $region8: #{tpu_custom_call.1} parent=1 // pred_region
      _
    $region9: #{tpu_custom_call.1} parent=1 // pred_fallthru
      _
    // Predicated region
    $region10: #{tpu_custom_call.1} parent=1 // pred_check
      _
    $region11: #{tpu_custom_call.1} parent=1 // pred_check_branch
      %15 = sbr.rel (0) target = $region13
    $region12: #{tpu_custom_call.1} parent=1 // pred_region
      _
    $region13: #{tpu_custom_call.1} parent=1 // pred_fallthru
      _
    // Predicated region
    $region14: #{tpu_custom_call.1} parent=1 // pred_check
      _
    $region15: #{tpu_custom_call.1} parent=1 // pred_check_branch
      %17 = sbr.rel (0) target = $region17
    $region16: #{tpu_custom_call.1} parent=1 // pred_region
      _
    $region17: #{tpu_custom_call.1} parent=1 // pred_fallthru
      _
    %v18 = vld [vmem:[%s0] sm:$0xff]
    %v19 = vld [vmem:[%s0 + $0x8] sm:$0xff]
    %v20 = vld [vmem:[%s0 + $0x10] sm:$0xff]
    %v21 = vld [vmem:[%s0 + $0x18] sm:$0xff]
    %v22 = vld [vmem:[%s0 + $0x20] sm:$0xff]
    %v23 = vld [vmem:[%s0 + $0x28] sm:$0xff]
    %v24 = vld [vmem:[%s0 + $0x30] sm:$0xff]
    %v25 = vld [vmem:[%s0 + $0x38] sm:$0xff]
    %v26 = vld [vmem:[%s0 + $0x40] sm:$0xff]
    %v27 = vld [vmem:[%s0 + $0x48] sm:$0xff]
    %v28 = vld [vmem:[%s0 + $0x50] sm:$0xff]
    %v29 = vld [vmem:[%s0 + $0x58] sm:$0xff]
    %v30 = vld [vmem:[%s0 + $0x60] sm:$0xff]
    %v31 = vld [vmem:[%s0 + $0x68] sm:$0xff]
    %v32 = vld [vmem:[%s0 + $0x70] sm:$0xff]
    %v33 = vld [vmem:[%s0 + $0x78] sm:$0xff]
    %v34 = vld [vmem:[%s0 + $0x80] sm:$0xff]
    %v35 = vld [vmem:[%s0 + $0x88] sm:$0xff]
    %v36 = vld [vmem:[%s0 + $0x90] sm:$0xff]
    %v37 = vld [vmem:[%s0 + $0x98] sm:$0xff]
    %v38 = vld [vmem:[%s0 + $0xa0] sm:$0xff]
    %v39 = vld [vmem:[%s0 + $0xa8] sm:$0xff]
    %v40 = vld [vmem:[%s0 + $0xb0] sm:$0xff]
    %v41 = vld [vmem:[%s0 + $0xb8] sm:$0xff]
    %v42 = vld [vmem:[%s0 + $0xc0] sm:$0xff]
    %v43 = vld [vmem:[%s0 + $0xc8] sm:$0xff]
    %v44 = vld [vmem:[%s0 + $0xd0] sm:$0xff]
    %v45 = vld [vmem:[%s0 + $0xd8] sm:$0xff]
    %v46 = vld [vmem:[%s0 + $0xe0] sm:$0xff]
    %v47 = vld [vmem:[%s0 + $0xe8] sm:$0xff]
    %v48 = vld [vmem:[%s0 + $0xf0] sm:$0xff]
    %v49 = vld [vmem:[%s0 + $0xf8] sm:$0xff]
    %v50 = vld [vmem:[%s0 + $0x100] sm:$0xff]
    %v51 = vld [vmem:[%s0 + $0x108] sm:$0xff]
    %v52 = vld [vmem:[%s0 + $0x110] sm:$0xff]
    %v53 = vld [vmem:[%s0 + $0x118] sm:$0xff]
    %v54 = vld [vmem:[%s0 + $0x120] sm:$0xff]
    %v55 = vld [vmem:[%s0 + $0x128] sm:$0xff]
    %v56 = vld [vmem:[%s0 + $0x130] sm:$0xff]
    %v57 = vld [vmem:[%s0 + $0x138] sm:$0xff]
    %v58 = vld [vmem:[%s0 + $0x140] sm:$0xff]
    %v59 = vld [vmem:[%s0 + $0x148] sm:$0xff]
    %v60 = vld [vmem:[%s0 + $0x150] sm:$0xff]
    %v61 = vld [vmem:[%s0 + $0x158] sm:$0xff]
    %v62 = vld [vmem:[%s0 + $0x160] sm:$0xff]
    %v63 = vld [vmem:[%s0 + $0x168] sm:$0xff]
    %v64 = vld [vmem:[%s0 + $0x170] sm:$0xff]
    %v65 = vld [vmem:[%s0 + $0x178] sm:$0xff]
    %v66 = vld [vmem:[%s0 + $0x180] sm:$0xff]
    %v67 = vld [vmem:[%s0 + $0x188] sm:$0xff]
    %v68 = vld [vmem:[%s0 + $0x190] sm:$0xff]
    %v69 = vld [vmem:[%s0 + $0x198] sm:$0xff]
    %v70 = vld [vmem:[%s0 + $0x1a0] sm:$0xff]
    %v71 = vld [vmem:[%s0 + $0x1a8] sm:$0xff]
    %v72 = vld [vmem:[%s0 + $0x1b0] sm:$0xff]
    %v73 = vld [vmem:[%s0 + $0x1b8] sm:$0xff]
    %v74 = vld [vmem:[%s0 + $0x1c0] sm:$0xff]
    %v75 = vld [vmem:[%s0 + $0x1c8] sm:$0xff]
    %v76 = vld [vmem:[%s0 + $0x1d0] sm:$0xff]
    %v77 = vld [vmem:[%s0 + $0x1d8] sm:$0xff]
    %v78 = vld [vmem:[%s0 + $0x1e0] sm:$0xff]
    %v79 = vld [vmem:[%s0 + $0x1e8] sm:$0xff]
    %v80 = vld [vmem:[%s0 + $0x1f0] sm:$0xff]
    %v81 = vld [vmem:[%s0 + $0x1f8] sm:$0xff]
    %v82 = vld [vmem:[%s0 + $0x200] sm:$0xff]
    %v83 = vld [vmem:[%s0 + $0x208] sm:$0xff]
    %v84 = vld [vmem:[%s0 + $0x210] sm:$0xff]
    %v85 = vld [vmem:[%s0 + $0x218] sm:$0xff]
    %v86 = vld [vmem:[%s0 + $0x220] sm:$0xff]
    %v87 = vld [vmem:[%s0 + $0x228] sm:$0xff]
    %v88 = vld [vmem:[%s0 + $0x230] sm:$0xff]
    %v89 = vld [vmem:[%s0 + $0x238] sm:$0xff]
    %v90 = vld [vmem:[%s0 + $0x240] sm:$0xff]
    %v91 = vld [vmem:[%s0 + $0x248] sm:$0xff]
    %v92 = vld [vmem:[%s0 + $0x250] sm:$0xff]
    %v93 = vld [vmem:[%s0 + $0x258] sm:$0xff]
    %v94 = vld [vmem:[%s0 + $0x260] sm:$0xff]
    %v95 = vld [vmem:[%s0 + $0x268] sm:$0xff]
    %v96 = vld [vmem:[%s0 + $0x270] sm:$0xff]
    %v97 = vld [vmem:[%s0 + $0x278] sm:$0xff]
    %v98 = vld [vmem:[%s0 + $0x280] sm:$0xff]
    %v99 = vld [vmem:[%s0 + $0x288] sm:$0xff]
    %v100 = vld [vmem:[%s0 + $0x290] sm:$0xff]
    %v101 = vld [vmem:[%s0 + $0x298] sm:$0xff]
    %v102 = vld [vmem:[%s0 + $0x2a0] sm:$0xff]
    %v103 = vld [vmem:[%s0 + $0x2a8] sm:$0xff]
    %v104 = vld [vmem:[%s0 + $0x2b0] sm:$0xff]
    %v105 = vld [vmem:[%s0 + $0x2b8] sm:$0xff]
    %v106 = vld [vmem:[%s0 + $0x2c0] sm:$0xff]
    %v107 = vld [vmem:[%s0 + $0x2c8] sm:$0xff]
    %v108 = vld [vmem:[%s0 + $0x2d0] sm:$0xff]
    %v109 = vld [vmem:[%s0 + $0x2d8] sm:$0xff]
    %v110 = vld [vmem:[%s0 + $0x2e0] sm:$0xff]
    %v111 = vld [vmem:[%s0 + $0x2e8] sm:$0xff]
    %v112 = vld [vmem:[%s0 + $0x2f0] sm:$0xff]
    %v113 = vld [vmem:[%s0 + $0x2f8] sm:$0xff]
    %v114 = vld [vmem:[%s0 + $0x300] sm:$0xff]
    %v115 = vld [vmem:[%s0 + $0x308] sm:$0xff]
    %v116 = vld [vmem:[%s0 + $0x310] sm:$0xff]
    %v117 = vld [vmem:[%s0 + $0x318] sm:$0xff]
    %v118 = vld [vmem:[%s0 + $0x320] sm:$0xff]
    %v119 = vld [vmem:[%s0 + $0x328] sm:$0xff]
    %v120 = vld [vmem:[%s0 + $0x330] sm:$0xff]
    %v121 = vld [vmem:[%s0 + $0x338] sm:$0xff]
    %v122 = vld [vmem:[%s0 + $0x340] sm:$0xff]
    %v123 = vld [vmem:[%s0 + $0x348] sm:$0xff]
    %v124 = vld [vmem:[%s0 + $0x350] sm:$0xff]
    %v125 = vld [vmem:[%s0 + $0x358] sm:$0xff]
    %v126 = vld [vmem:[%s0 + $0x360] sm:$0xff]
    %v127 = vld [vmem:[%s0 + $0x368] sm:$0xff]
    %v128 = vld [vmem:[%s0 + $0x370] sm:$0xff]
    %v129 = vld [vmem:[%s0 + $0x378] sm:$0xff]
    %v130 = vld [vmem:[%s0 + $0x380] sm:$0xff]
    %v131 = vld [vmem:[%s0 + $0x388] sm:$0xff]
    %v132 = vld [vmem:[%s0 + $0x390] sm:$0xff]
    %v133 = vld [vmem:[%s0 + $0x398] sm:$0xff]
    %v134 = vld [vmem:[%s0 + $0x3a0] sm:$0xff]
    %v135 = vld [vmem:[%s0 + $0x3a8] sm:$0xff]
    %v136 = vld [vmem:[%s0 + $0x3b0] sm:$0xff]
    %v137 = vld [vmem:[%s0 + $0x3b8] sm:$0xff]
    %v138 = vld [vmem:[%s0 + $0x3c0] sm:$0xff]
    %v139 = vld [vmem:[%s0 + $0x3c8] sm:$0xff]
    %v140 = vld [vmem:[%s0 + $0x3d0] sm:$0xff]
    %v141 = vld [vmem:[%s0 + $0x3d8] sm:$0xff]
    %v142 = vld [vmem:[%s0 + $0x3e0] sm:$0xff]
    %v143 = vld [vmem:[%s0 + $0x3e8] sm:$0xff]
    %v144 = vld [vmem:[%s0 + $0x3f0] sm:$0xff]
    %v145 = vld [vmem:[%s0 + $0x3f8] sm:$0xff]
    %v146 = vld [vmem:[%s1] sm:$0xff]
    %v147 = vld [vmem:[%s1 + $0x8] sm:$0xff]
    %v148 = vld [vmem:[%s1 + $0x10] sm:$0xff]
    %v149 = vld [vmem:[%s1 + $0x18] sm:$0xff]
    %v150 = vld [vmem:[%s1 + $0x20] sm:$0xf]
    %v151 = vld [vmem:[%s2] sm:$0x1]
    %v153 = vlaneseq
    %v154 = vshrl.u32 %v153, 7
    %v155 = vsub.s32 0, %v154
    %v156 = vrot.slane %v151, %v155
    %vm158 = vcmask 293888
    %v160 = vsel %vm158, %v18, 0
    %v163 = vsel %vm158, %v19, 0
    %v166 = vsel %vm158, %v20, 0
    %v169 = vsel %vm158, %v21, 0
    %v172 = vsel %vm158, %v22, 0
    %v175 = vsel %vm158, %v23, 0
    %v178 = vsel %vm158, %v24, 0
    %v181 = vsel %vm158, %v25, 0
    %v184 = vsel %vm158, %v26, 0
    %v187 = vsel %vm158, %v27, 0
    %v190 = vsel %vm158, %v28, 0
    %v193 = vsel %vm158, %v29, 0
    %v196 = vsel %vm158, %v30, 0
    %v199 = vsel %vm158, %v31, 0
    %v202 = vsel %vm158, %v32, 0
    %v205 = vsel %vm158, %v33, 0
    %v208 = vsel %vm158, %v34, 0
    %v211 = vsel %vm158, %v35, 0
    %v214 = vsel %vm158, %v36, 0
    %v217 = vsel %vm158, %v37, 0
    %v220 = vsel %vm158, %v38, 0
    %v223 = vsel %vm158, %v39, 0
    %v226 = vsel %vm158, %v40, 0
    %v229 = vsel %vm158, %v41, 0
    %v232 = vsel %vm158, %v42, 0
    %v235 = vsel %vm158, %v43, 0
    %v238 = vsel %vm158, %v44, 0
    %v241 = vsel %vm158, %v45, 0
    %v244 = vsel %vm158, %v46, 0
    %v247 = vsel %vm158, %v47, 0
    %v250 = vsel %vm158, %v48, 0
    %v253 = vsel %vm158, %v49, 0
    %v256 = vsel %vm158, %v50, 0
    %v259 = vsel %vm158, %v51, 0
    %v262 = vsel %vm158, %v52, 0
    %v265 = vsel %vm158, %v53, 0
    %v268 = vsel %vm158, %v54, 0
    %v271 = vsel %vm158, %v55, 0
    %v274 = vsel %vm158, %v56, 0
    %v277 = vsel %vm158, %v57, 0
    %v280 = vsel %vm158, %v58, 0
    %v283 = vsel %vm158, %v59, 0
    %v286 = vsel %vm158, %v60, 0
    %v289 = vsel %vm158, %v61, 0
    %v292 = vsel %vm158, %v62, 0
    %v295 = vsel %vm158, %v63, 0
    %v298 = vsel %vm158, %v64, 0
    %v301 = vsel %vm158, %v65, 0
    %v304 = vsel %vm158, %v66, 0
    %v307 = vsel %vm158, %v67, 0
    %v310 = vsel %vm158, %v68, 0
    %v313 = vsel %vm158, %v69, 0
    %v316 = vsel %vm158, %v70, 0
    %v319 = vsel %vm158, %v71, 0
    %v322 = vsel %vm158, %v72, 0
    %v325 = vsel %vm158, %v73, 0
    %v328 = vsel %vm158, %v74, 0
    %v331 = vsel %vm158, %v75, 0
    %v334 = vsel %vm158, %v76, 0
    %v337 = vsel %vm158, %v77, 0
    %v340 = vsel %vm158, %v78, 0
    %v343 = vsel %vm158, %v79, 0
    %v346 = vsel %vm158, %v80, 0
    %v349 = vsel %vm158, %v81, 0
    %v352 = vsel %vm158, %v82, 0
    %v355 = vsel %vm158, %v83, 0
    %v358 = vsel %vm158, %v84, 0
    %v361 = vsel %vm158, %v85, 0
    %v364 = vsel %vm158, %v86, 0
    %v367 = vsel %vm158, %v87, 0
    %v370 = vsel %vm158, %v88, 0
    %v373 = vsel %vm158, %v89, 0
    %v376 = vsel %vm158, %v90, 0
    %v379 = vsel %vm158, %v91, 0
    %v382 = vsel %vm158, %v92, 0
    %v385 = vsel %vm158, %v93, 0
    %v388 = vsel %vm158, %v94, 0
    %v391 = vsel %vm158, %v95, 0
    %v394 = vsel %vm158, %v96, 0
    %v397 = vsel %vm158, %v97, 0
    %v400 = vsel %vm158, %v98, 0
    %v403 = vsel %vm158, %v99, 0
    %v406 = vsel %vm158, %v100, 0
    %v409 = vsel %vm158, %v101, 0
    %v412 = vsel %vm158, %v102, 0
    %v415 = vsel %vm158, %v103, 0
    %v418 = vsel %vm158, %v104, 0
    %v421 = vsel %vm158, %v105, 0
    %v424 = vsel %vm158, %v106, 0
    %v427 = vsel %vm158, %v107, 0
    %v430 = vsel %vm158, %v108, 0
    %v433 = vsel %vm158, %v109, 0
    %v436 = vsel %vm158, %v110, 0
    %v439 = vsel %vm158, %v111, 0
    %v442 = vsel %vm158, %v112, 0
    %v445 = vsel %vm158, %v113, 0
    %v448 = vsel %vm158, %v114, 0
    %v451 = vsel %vm158, %v115, 0
    %v454 = vsel %vm158, %v116, 0
    %v457 = vsel %vm158, %v117, 0
    %v460 = vsel %vm158, %v118, 0
    %v463 = vsel %vm158, %v119, 0
    %v466 = vsel %vm158, %v120, 0
    %v469 = vsel %vm158, %v121, 0
    %v472 = vsel %vm158, %v122, 0
    %v475 = vsel %vm158, %v123, 0
    %v478 = vsel %vm158, %v124, 0
    %v481 = vsel %vm158, %v125, 0
    %v484 = vsel %vm158, %v126, 0
    %v487 = vsel %vm158, %v127, 0
    %v490 = vsel %vm158, %v128, 0
    %v493 = vsel %vm158, %v129, 0
    %v496 = vsel %vm158, %v130, 0
    %v499 = vsel %vm158, %v131, 0
    %v502 = vsel %vm158, %v132, 0
    %v505 = vsel %vm158, %v133, 0
    %v508 = vsel %vm158, %v134, 0
    %v511 = vsel %vm158, %v135, 0
    %v514 = vsel %vm158, %v136, 0
    %v517 = vsel %vm158, %v137, 0
    %v520 = vsel %vm158, %v138, 0
    %v523 = vsel %vm158, %v139, 0
    %v526 = vsel %vm158, %v140, 0
    %v529 = vsel %vm158, %v141, 0
    %v532 = vsel %vm158, %v142, 0
    %v535 = vsel %vm158, %v143, 0
    %v538 = vsel %vm158, %v144, 0
    %v541 = vsel %vm158, %v145, 0
    %vm543 = vcmask 1043456
    %v545 = vsel %vm543, %v150, 0
    %547 = vmatprep.subr.mxu0 0.0
    %548 = vmatpush1.msra.mxu0 %v146
    %549 = vmatprep.subr.mxu0 0.0
    %550 = vmatpush1.msra.mxu0 %v147
    %551 = vmatprep.subr.mxu0 0.0
    %552 = vmatpush1.msra.mxu0 %v148
    %553 = vmatprep.subr.mxu0 0.0
    %554 = vmatpush1.msra.mxu0 %v149
    %555 = vmatprep.subr.mxu0 0.0
    %556 = vmatpush1.msra.mxu0 %v545
    %557 = vmatprep.subr.mxu0 0.0
    %558 = vmatpush1.msra.mxu0 0.0
    %559 = vmatprep.subr.mxu0 0.0
    %560 = vmatpush1.msra.mxu0 0.0
    %561 = vmatprep.subr.mxu0 0.0
    %562 = vmatpush1.msra.mxu0 0.0
    %563 = vmatprep.subr.mxu0 0.0
    %564 = vmatpush1.msra.mxu0 0.0
    %565 = vmatprep.subr.mxu0 0.0
    %566 = vmatpush1.msra.mxu0 0.0
    %567 = vmatprep.subr.mxu0 0.0
    %568 = vmatpush1.msra.mxu0 0.0
    %569 = vmatprep.subr.mxu0 0.0
    %570 = vmatpush1.msra.mxu0 0.0
    %571 = vmatprep.subr.mxu0 0.0
    %572 = vmatpush1.msra.mxu0 0.0
    %573 = vmatprep.subr.mxu0 0.0
    %574 = vmatpush1.msra.mxu0 0.0
    %575 = vmatprep.subr.mxu0 0.0
    %576 = vmatpush1.msra.mxu0 0.0
    %577 = vmatprep.subr.mxu0 0.0
    %578 = vmatpush1.msra.mxu0 0.0
    %579 = vmatprep.subr.mxu0 0.0
    %580 = vmatpush1.msra.mxu0 0.0
    %581 = vmatprep.subr.mxu0 0.0
    %582 = vmatpush1.msra.mxu0 0.0
    %583 = vmatprep.subr.mxu0 0.0
    %584 = vmatpush1.msra.mxu0 0.0
    %585 = vmatprep.subr.mxu0 0.0
    %586 = vmatpush1.msra.mxu0 0.0
    %587 = vmatprep.subr.mxu0 0.0
    %588 = vmatpush1.msra.mxu0 0.0
    %589 = vmatprep.subr.mxu0 0.0
    %590 = vmatpush1.msra.mxu0 0.0
    %591 = vmatprep.subr.mxu0 0.0
    %592 = vmatpush1.msra.mxu0 0.0
    %593 = vmatprep.subr.mxu0 0.0
    %594 = vmatpush1.msra.mxu0 0.0
    %595 = vmatprep.subr.mxu0 0.0
    %596 = vmatpush1.msra.mxu0 0.0
    %597 = vmatprep.subr.mxu0 0.0
    %598 = vmatpush1.msra.mxu0 0.0
    %599 = vmatprep.subr.mxu0 0.0
    %600 = vmatpush1.msra.mxu0 0.0
    %601 = vmatprep.subr.mxu0 0.0
    %602 = vmatpush1.msra.mxu0 0.0
    %603 = vmatprep.subr.mxu0 0.0
    %604 = vmatpush1.msra.mxu0 0.0
    %605 = vmatprep.subr.mxu0 0.0
    %606 = vmatpush1.msra.mxu0 0.0
    %607 = vmatprep.subr.mxu0 0.0
    %608 = vmatpush1.msra.mxu0 0.0
    %609 = vmatprep.subr.mxu0 0.0
    %610 = vmatpush1.msra.mxu0 0.0
    %611 = vmatprep.mubr.f32.mxu0 0.0
    %612 = vmatmul.mubr.f32.gmra.mrb[0].mxu0 %v160
    %v613 = vpop.f32.mrb[0].mxu0
    %v614 = vadd.f32 %v156, %v613
    %v615 = vpop.f32.mrb[0].mxu0
    %616 = vmatprep.mubr.f32.mxu0 0.0
    %617 = vmatmul.mubr.f32.gmra.mrb[0].mxu0 %v163
    %v618 = vpop.f32.mrb[0].mxu0
    %v619 = vadd.f32 %v156, %v618
    %v620 = vpop.f32.mrb[0].mxu0
    %621 = vmatprep.mubr.f32.mxu0 0.0
    %622 = vmatmul.mubr.f32.gmra.mrb[0].mxu0 %v166
    %v623 = vpop.f32.mrb[0].mxu0
    %v624 = vadd.f32 %v156, %v623
    %v625 = vpop.f32.mrb[0].mxu0
    %626 = vmatprep.mubr.f32.mxu0 0.0
    %627 = vmatmul.mubr.f32.gmra.mrb[0].mxu0 %v169
    %v628 = vpop.f32.mrb[0].mxu0
    %v629 = vadd.f32 %v156, %v628
    %v630 = vpop.f32.mrb[0].mxu0
    %631 = vmatprep.mubr.f32.mxu0 0.0
    %632 = vmatmul.mubr.f32.gmra.mrb[0].mxu0 %v172
    %v633 = vpop.f32.mrb[0].mxu0
    %v634 = vadd.f32 %v156, %v633
    %v635 = vpop.f32.mrb[0].mxu0
    %636 = vmatprep.mubr.f32.mxu0 0.0
    %637 = vmatmul.mubr.f32.gmra.mrb[0].mxu0 %v175
    %v638 = vpop.f32.mrb[0].mxu0
    %v639 = vadd.f32 %v156, %v638
    %v640 = vpop.f32.mrb[0].mxu0
    %641 = vmatprep.mubr.f32.mxu0 0.0
    %642 = vmatmul.mubr.f32.gmra.mrb[0].mxu0 %v178
    %v643 = vpop.f32.mrb[0].mxu0
    %v644 = vadd.f32 %v156, %v643
    %v645 = vpop.f32.mrb[0].mxu0
    %646 = vmatprep.mubr.f32.mxu0 0.0
    %647 = vmatmul.mubr.f32.gmra.mrb[0].mxu0 %v181
    %v648 = vpop.f32.mrb[0].mxu0
    %v649 = vadd.f32 %v156, %v648
    %v650 = vpop.f32.mrb[0].mxu0
    %651 = vmatprep.mubr.f32.mxu0 0.0
    %652 = vmatmul.mubr.f32.gmra.mrb[0].mxu0 %v184
    %v653 = vpop.f32.mrb[0].mxu0
    %v654 = vadd.f32 %v156, %v653
    %v655 = vpop.f32.mrb[0].mxu0
    %656 = vmatprep.mubr.f32.mxu0 0.0
    %657 = vmatmul.mubr.f32.gmra.mrb[0].mxu0 %v187
    %v658 = vpop.f32.mrb[0].mxu0
    %v659 = vadd.f32 %v156, %v658
    %v660 = vpop.f32.mrb[0].mxu0
    %661 = vmatprep.mubr.f32.mxu0 0.0
    %662 = vmatmul.mubr.f32.gmra.mrb[0].mxu0 %v190
    %v663 = vpop.f32.mrb[0].mxu0
    %v664 = vadd.f32 %v156, %v663
    %v665 = vpop.f32.mrb[0].mxu0
    %666 = vmatprep.mubr.f32.mxu0 0.0
    %667 = vmatmul.mubr.f32.gmra.mrb[0].mxu0 %v193
    %v668 = vpop.f32.mrb[0].mxu0
    %v669 = vadd.f32 %v156, %v668
    %v670 = vpop.f32.mrb[0].mxu0
    %671 = vmatprep.mubr.f32.mxu0 0.0
    %672 = vmatmul.mubr.f32.gmra.mrb[0].mxu0 %v196
    %v673 = vpop.f32.mrb[0].mxu0
    %v674 = vadd.f32 %v156, %v673
    %v675 = vpop.f32.mrb[0].mxu0
    %676 = vmatprep.mubr.f32.mxu0 0.0
    %677 = vmatmul.mubr.f32.gmra.mrb[0].mxu0 %v199
    %v678 = vpop.f32.mrb[0].mxu0
    %v679 = vadd.f32 %v156, %v678
    %v680 = vpop.f32.mrb[0].mxu0
    %681 = vmatprep.mubr.f32.mxu0 0.0
    %682 = vmatmul.mubr.f32.gmra.mrb[0].mxu0 %v202
    %v683 = vpop.f32.mrb[0].mxu0
    %v684 = vadd.f32 %v156, %v683
    %v685 = vpop.f32.mrb[0].mxu0
    %686 = vmatprep.mubr.f32.mxu0 0.0
    %687 = vmatmul.mubr.f32.gmra.mrb[0].mxu0 %v205
    %v688 = vpop.f32.mrb[0].mxu0
    %v689 = vadd.f32 %v156, %v688
    %v690 = vpop.f32.mrb[0].mxu0
    %691 = vmatprep.mubr.f32.mxu0 0.0
    %692 = vmatmul.mubr.f32.gmra.mrb[0].mxu0 %v208
    %v693 = vpop.f32.mrb[0].mxu0
    %v694 = vadd.f32 %v156, %v693
    %v695 = vpop.f32.mrb[0].mxu0
    %696 = vmatprep.mubr.f32.mxu0 0.0
    %697 = vmatmul.mubr.f32.gmra.mrb[0].mxu0 %v211
    %v698 = vpop.f32.mrb[0].mxu0
    %v699 = vadd.f32 %v156, %v698
    %v700 = vpop.f32.mrb[0].mxu0
    %701 = vmatprep.mubr.f32.mxu0 0.0
    %702 = vmatmul.mubr.f32.gmra.mrb[0].mxu0 %v214
    %v703 = vpop.f32.mrb[0].mxu0
    %v704 = vadd.f32 %v156, %v703
    %v705 = vpop.f32.mrb[0].mxu0
    %706 = vmatprep.mubr.f32.mxu0 0.0
    %707 = vmatmul.mubr.f32.gmra.mrb[0].mxu0 %v217
    %v708 = vpop.f32.mrb[0].mxu0
    %v709 = vadd.f32 %v156, %v708
    %v710 = vpop.f32.mrb[0].mxu0
    %711 = vmatprep.mubr.f32.mxu0 0.0
    %712 = vmatmul.mubr.f32.gmra.mrb[0].mxu0 %v220
    %v713 = vpop.f32.mrb[0].mxu0
    %v714 = vadd.f32 %v156, %v713
    %v715 = vpop.f32.mrb[0].mxu0
    %716 = vmatprep.mubr.f32.mxu0 0.0
    %717 = vmatmul.mubr.f32.gmra.mrb[0].mxu0 %v223
    %v718 = vpop.f32.mrb[0].mxu0
    %v719 = vadd.f32 %v156, %v718
    %v720 = vpop.f32.mrb[0].mxu0
    %721 = vmatprep.mubr.f32.mxu0 0.0
    %722 = vmatmul.mubr.f32.gmra.mrb[0].mxu0 %v226
    %v723 = vpop.f32.mrb[0].mxu0
    %v724 = vadd.f32 %v156, %v723
    %v725 = vpop.f32.mrb[0].mxu0
    %726 = vmatprep.mubr.f32.mxu0 0.0
    %727 = vmatmul.mubr.f32.gmra.mrb[0].mxu0 %v229
    %v728 = vpop.f32.mrb[0].mxu0
    %v729 = vadd.f32 %v156, %v728
    %v730 = vpop.f32.mrb[0].mxu0
    %731 = vmatprep.mubr.f32.mxu0 0.0
    %732 = vmatmul.mubr.f32.gmra.mrb[0].mxu0 %v232
    %v733 = vpop.f32.mrb[0].mxu0
    %v734 = vadd.f32 %v156, %v733
    %v735 = vpop.f32.mrb[0].mxu0
    %736 = vmatprep.mubr.f32.mxu0 0.0
    %737 = vmatmul.mubr.f32.gmra.mrb[0].mxu0 %v235
    %v738 = vpop.f32.mrb[0].mxu0
    %v739 = vadd.f32 %v156, %v738
    %v740 = vpop.f32.mrb[0].mxu0
    %741 = vmatprep.mubr.f32.mxu0 0.0
    %742 = vmatmul.mubr.f32.gmra.mrb[0].mxu0 %v238
    %v743 = vpop.f32.mrb[0].mxu0
    %v744 = vadd.f32 %v156, %v743
    %v745 = vpop.f32.mrb[0].mxu0
    %746 = vmatprep.mubr.f32.mxu0 0.0
    %747 = vmatmul.mubr.f32.gmra.mrb[0].mxu0 %v241
    %v748 = vpop.f32.mrb[0].mxu0
    %v749 = vadd.f32 %v156, %v748
    %v750 = vpop.f32.mrb[0].mxu0
    %751 = vmatprep.mubr.f32.mxu0 0.0
    %752 = vmatmul.mubr.f32.gmra.mrb[0].mxu0 %v244
    %v753 = vpop.f32.mrb[0].mxu0
    %v754 = vadd.f32 %v156, %v753
    %v755 = vpop.f32.mrb[0].mxu0
    %756 = vmatprep.mubr.f32.mxu0 0.0
    %757 = vmatmul.mubr.f32.gmra.mrb[0].mxu0 %v247
    %v758 = vpop.f32.mrb[0].mxu0
    %v759 = vadd.f32 %v156, %v758
    %v760 = vpop.f32.mrb[0].mxu0
    %761 = vmatprep.mubr.f32.mxu0 0.0
    %762 = vmatmul.mubr.f32.gmra.mrb[0].mxu0 %v250
    %v763 = vpop.f32.mrb[0].mxu0
    %v764 = vadd.f32 %v156, %v763
    %v765 = vpop.f32.mrb[0].mxu0
    %766 = vmatprep.mubr.f32.mxu0 0.0
    %767 = vmatmul.mubr.f32.gmra.mrb[0].mxu0 %v253
    %v768 = vpop.f32.mrb[0].mxu0
    %v769 = vadd.f32 %v156, %v768
    %v770 = vpop.f32.mrb[0].mxu0
    %771 = vmatprep.mubr.f32.mxu0 0.0
    %772 = vmatmul.mubr.f32.gmra.mrb[0].mxu0 %v256
    %v773 = vpop.f32.mrb[0].mxu0
    %v774 = vadd.f32 %v156, %v773
    %v775 = vpop.f32.mrb[0].mxu0
    %776 = vmatprep.mubr.f32.mxu0 0.0
    %777 = vmatmul.mubr.f32.gmra.mrb[0].mxu0 %v259
    %v778 = vpop.f32.mrb[0].mxu0
    %v779 = vadd.f32 %v156, %v778
    %v780 = vpop.f32.mrb[0].mxu0
    %781 = vmatprep.mubr.f32.mxu0 0.0
    %782 = vmatmul.mubr.f32.gmra.mrb[0].mxu0 %v262
    %v783 = vpop.f32.mrb[0].mxu0
    %v784 = vadd.f32 %v156, %v783
    %v785 = vpop.f32.mrb[0].mxu0
    %786 = vmatprep.mubr.f32.mxu0 0.0
    %787 = vmatmul.mubr.f32.gmra.mrb[0].mxu0 %v265
    %v788 = vpop.f32.mrb[0].mxu0
    %v789 = vadd.f32 %v156, %v788
    %v790 = vpop.f32.mrb[0].mxu0
    %791 = vmatprep.mubr.f32.mxu0 0.0
    %792 = vmatmul.mubr.f32.gmra.mrb[0].mxu0 %v268
    %v793 = vpop.f32.mrb[0].mxu0
    %v794 = vadd.f32 %v156, %v793
    %v795 = vpop.f32.mrb[0].mxu0
    %796 = vmatprep.mubr.f32.mxu0 0.0
    %797 = vmatmul.mubr.f32.gmra.mrb[0].mxu0 %v271
    %v798 = vpop.f32.mrb[0].mxu0
    %v799 = vadd.f32 %v156, %v798
    %v800 = vpop.f32.mrb[0].mxu0
    %801 = vmatprep.mubr.f32.mxu0 0.0
    %802 = vmatmul.mubr.f32.gmra.mrb[0].mxu0 %v274
    %v803 = vpop.f32.mrb[0].mxu0
    %v804 = vadd.f32 %v156, %v803
    %v805 = vpop.f32.mrb[0].mxu0
    %806 = vmatprep.mubr.f32.mxu0 0.0
    %807 = vmatmul.mubr.f32.gmra.mrb[0].mxu0 %v277
    %v808 = vpop.f32.mrb[0].mxu0
    %v809 = vadd.f32 %v156, %v808
    %v810 = vpop.f32.mrb[0].mxu0
    %811 = vmatprep.mubr.f32.mxu0 0.0
    %812 = vmatmul.mubr.f32.gmra.mrb[0].mxu0 %v280
    %v813 = vpop.f32.mrb[0].mxu0
    %v814 = vadd.f32 %v156, %v813
    %v815 = vpop.f32.mrb[0].mxu0
    %816 = vmatprep.mubr.f32.mxu0 0.0
    %817 = vmatmul.mubr.f32.gmra.mrb[0].mxu0 %v283
    %v818 = vpop.f32.mrb[0].mxu0
    %v819 = vadd.f32 %v156, %v818
    %v820 = vpop.f32.mrb[0].mxu0
    %821 = vmatprep.mubr.f32.mxu0 0.0
    %822 = vmatmul.mubr.f32.gmra.mrb[0].mxu0 %v286
    %v823 = vpop.f32.mrb[0].mxu0
    %v824 = vadd.f32 %v156, %v823
    %v825 = vpop.f32.mrb[0].mxu0
    %826 = vmatprep.mubr.f32.mxu0 0.0
    %827 = vmatmul.mubr.f32.gmra.mrb[0].mxu0 %v289
    %v828 = vpop.f32.mrb[0].mxu0
    %v829 = vadd.f32 %v156, %v828
    %v830 = vpop.f32.mrb[0].mxu0
    %831 = vmatprep.mubr.f32.mxu0 0.0
    %832 = vmatmul.mubr.f32.gmra.mrb[0].mxu0 %v292
    %v833 = vpop.f32.mrb[0].mxu0
    %v834 = vadd.f32 %v156, %v833
    %v835 = vpop.f32.mrb[0].mxu0
    %836 = vmatprep.mubr.f32.mxu0 0.0
    %837 = vmatmul.mubr.f32.gmra.mrb[0].mxu0 %v295
    %v838 = vpop.f32.mrb[0].mxu0
    %v839 = vadd.f32 %v156, %v838
    %v840 = vpop.f32.mrb[0].mxu0
    %841 = vmatprep.mubr.f32.mxu0 0.0
    %842 = vmatmul.mubr.f32.gmra.mrb[0].mxu0 %v298
    %v843 = vpop.f32.mrb[0].mxu0
    %v844 = vadd.f32 %v156, %v843
    %v845 = vpop.f32.mrb[0].mxu0
    %846 = vmatprep.mubr.f32.mxu0 0.0
    %847 = vmatmul.mubr.f32.gmra.mrb[0].mxu0 %v301
    %v848 = vpop.f32.mrb[0].mxu0
    %v849 = vadd.f32 %v156, %v848
    %v850 = vpop.f32.mrb[0].mxu0
    %851 = vmatprep.mubr.f32.mxu0 0.0
    %852 = vmatmul.mubr.f32.gmra.mrb[0].mxu0 %v304
    %v853 = vpop.f32.mrb[0].mxu0
    %v854 = vadd.f32 %v156, %v853
    %v855 = vpop.f32.mrb[0].mxu0
    %856 = vmatprep.mubr.f32.mxu0 0.0
    %857 = vmatmul.mubr.f32.gmra.mrb[0].mxu0 %v307
    %v858 = vpop.f32.mrb[0].mxu0
    %v859 = vadd.f32 %v156, %v858
    %v860 = vpop.f32.mrb[0].mxu0
    %861 = vmatprep.mubr.f32.mxu0 0.0
    %862 = vmatmul.mubr.f32.gmra.mrb[0].mxu0 %v310
    %v863 = vpop.f32.mrb[0].mxu0
    %v864 = vadd.f32 %v156, %v863
    %v865 = vpop.f32.mrb[0].mxu0
    %866 = vmatprep.mubr.f32.mxu0 0.0
    %867 = vmatmul.mubr.f32.gmra.mrb[0].mxu0 %v313
    %v868 = vpop.f32.mrb[0].mxu0
    %v869 = vadd.f32 %v156, %v868
    %v870 = vpop.f32.mrb[0].mxu0
    %871 = vmatprep.mubr.f32.mxu0 0.0
    %872 = vmatmul.mubr.f32.gmra.mrb[0].mxu0 %v316
    %v873 = vpop.f32.mrb[0].mxu0
    %v874 = vadd.f32 %v156, %v873
    %v875 = vpop.f32.mrb[0].mxu0
    %876 = vmatprep.mubr.f32.mxu0 0.0
    %877 = vmatmul.mubr.f32.gmra.mrb[0].mxu0 %v319
    %v878 = vpop.f32.mrb[0].mxu0
    %v879 = vadd.f32 %v156, %v878
    %v880 = vpop.f32.mrb[0].mxu0
    %881 = vmatprep.mubr.f32.mxu0 0.0
    %882 = vmatmul.mubr.f32.gmra.mrb[0].mxu0 %v322
    %v883 = vpop.f32.mrb[0].mxu0
    %v884 = vadd.f32 %v156, %v883
    %v885 = vpop.f32.mrb[0].mxu0
    %886 = vmatprep.mubr.f32.mxu0 0.0
    %887 = vmatmul.mubr.f32.gmra.mrb[0].mxu0 %v325
    %v888 = vpop.f32.mrb[0].mxu0
    %v889 = vadd.f32 %v156, %v888
    %v890 = vpop.f32.mrb[0].mxu0
    %891 = vmatprep.mubr.f32.mxu0 0.0
    %892 = vmatmul.mubr.f32.gmra.mrb[0].mxu0 %v328
    %v893 = vpop.f32.mrb[0].mxu0
    %v894 = vadd.f32 %v156, %v893
    %v895 = vpop.f32.mrb[0].mxu0
    %896 = vmatprep.mubr.f32.mxu0 0.0
    %897 = vmatmul.mubr.f32.gmra.mrb[0].mxu0 %v331
    %v898 = vpop.f32.mrb[0].mxu0
    %v899 = vadd.f32 %v156, %v898
    %v900 = vpop.f32.mrb[0].mxu0
    %901 = vmatprep.mubr.f32.mxu0 0.0
    %902 = vmatmul.mubr.f32.gmra.mrb[0].mxu0 %v334
    %v903 = vpop.f32.mrb[0].mxu0
    %v904 = vadd.f32 %v156, %v903
    %v905 = vpop.f32.mrb[0].mxu0
    %906 = vmatprep.mubr.f32.mxu0 0.0
    %907 = vmatmul.mubr.f32.gmra.mrb[0].mxu0 %v337
    %v908 = vpop.f32.mrb[0].mxu0
    %v909 = vadd.f32 %v156, %v908
    %v910 = vpop.f32.mrb[0].mxu0
    %911 = vmatprep.mubr.f32.mxu0 0.0
    %912 = vmatmul.mubr.f32.gmra.mrb[0].mxu0 %v340
    %v913 = vpop.f32.mrb[0].mxu0
    %v914 = vadd.f32 %v156, %v913
    %v915 = vpop.f32.mrb[0].mxu0
    %916 = vmatprep.mubr.f32.mxu0 0.0
    %917 = vmatmul.mubr.f32.gmra.mrb[0].mxu0 %v343
    %v918 = vpop.f32.mrb[0].mxu0
    %v919 = vadd.f32 %v156, %v918
    %v920 = vpop.f32.mrb[0].mxu0
    %921 = vmatprep.mubr.f32.mxu0 0.0
    %922 = vmatmul.mubr.f32.gmra.mrb[0].mxu0 %v346
    %v923 = vpop.f32.mrb[0].mxu0
    %v924 = vadd.f32 %v156, %v923
    %v925 = vpop.f32.mrb[0].mxu0
    %926 = vmatprep.mubr.f32.mxu0 0.0
    %927 = vmatmul.mubr.f32.gmra.mrb[0].mxu0 %v349
    %v928 = vpop.f32.mrb[0].mxu0
    %v929 = vadd.f32 %v156, %v928
    %v930 = vpop.f32.mrb[0].mxu0
    %931 = vmatprep.mubr.f32.mxu0 0.0
    %932 = vmatmul.mubr.f32.gmra.mrb[0].mxu0 %v352
    %v933 = vpop.f32.mrb[0].mxu0
    %v934 = vadd.f32 %v156, %v933
    %v935 = vpop.f32.mrb[0].mxu0
    %936 = vmatprep.mubr.f32.mxu0 0.0
    %937 = vmatmul.mubr.f32.gmra.mrb[0].mxu0 %v355
    %v938 = vpop.f32.mrb[0].mxu0
    %v939 = vadd.f32 %v156, %v938
    %v940 = vpop.f32.mrb[0].mxu0
    %941 = vmatprep.mubr.f32.mxu0 0.0
    %942 = vmatmul.mubr.f32.gmra.mrb[0].mxu0 %v358
    %v943 = vpop.f32.mrb[0].mxu0
    %v944 = vadd.f32 %v156, %v943
    %v945 = vpop.f32.mrb[0].mxu0
    %946 = vmatprep.mubr.f32.mxu0 0.0
    %947 = vmatmul.mubr.f32.gmra.mrb[0].mxu0 %v361
    %v948 = vpop.f32.mrb[0].mxu0
    %v949 = vadd.f32 %v156, %v948
    %v950 = vpop.f32.mrb[0].mxu0
    %951 = vmatprep.mubr.f32.mxu0 0.0
    %952 = vmatmul.mubr.f32.gmra.mrb[0].mxu0 %v364
    %v953 = vpop.f32.mrb[0].mxu0
    %v954 = vadd.f32 %v156, %v953
    %v955 = vpop.f32.mrb[0].mxu0
    %956 = vmatprep.mubr.f32.mxu0 0.0
    %957 = vmatmul.mubr.f32.gmra.mrb[0].mxu0 %v367
    %v958 = vpop.f32.mrb[0].mxu0
    %v959 = vadd.f32 %v156, %v958
    %v960 = vpop.f32.mrb[0].mxu0
    %961 = vmatprep.mubr.f32.mxu0 0.0
    %962 = vmatmul.mubr.f32.gmra.mrb[0].mxu0 %v370
    %v963 = vpop.f32.mrb[0].mxu0
    %v964 = vadd.f32 %v156, %v963
    %v965 = vpop.f32.mrb[0].mxu0
    %966 = vmatprep.mubr.f32.mxu0 0.0
    %967 = vmatmul.mubr.f32.gmra.mrb[0].mxu0 %v373
    %v968 = vpop.f32.mrb[0].mxu0
    %v969 = vadd.f32 %v156, %v968
    %v970 = vpop.f32.mrb[0].mxu0
    %971 = vmatprep.mubr.f32.mxu0 0.0
    %972 = vmatmul.mubr.f32.gmra.mrb[0].mxu0 %v376
    %v973 = vpop.f32.mrb[0].mxu0
    %v974 = vadd.f32 %v156, %v973
    %v975 = vpop.f32.mrb[0].mxu0
    %976 = vmatprep.mubr.f32.mxu0 0.0
    %977 = vmatmul.mubr.f32.gmra.mrb[0].mxu0 %v379
    %v978 = vpop.f32.mrb[0].mxu0
    %v979 = vadd.f32 %v156, %v978
    %v980 = vpop.f32.mrb[0].mxu0
    %981 = vmatprep.mubr.f32.mxu0 0.0
    %982 = vmatmul.mubr.f32.gmra.mrb[0].mxu0 %v382
    %v983 = vpop.f32.mrb[0].mxu0
    %v984 = vadd.f32 %v156, %v983
    %v985 = vpop.f32.mrb[0].mxu0
    %986 = vmatprep.mubr.f32.mxu0 0.0
    %987 = vmatmul.mubr.f32.gmra.mrb[0].mxu0 %v385
    %v988 = vpop.f32.mrb[0].mxu0
    %v989 = vadd.f32 %v156, %v988
    %v990 = vpop.f32.mrb[0].mxu0
    %991 = vmatprep.mubr.f32.mxu0 0.0
    %992 = vmatmul.mubr.f32.gmra.mrb[0].mxu0 %v388
    %v993 = vpop.f32.mrb[0].mxu0
    %v994 = vadd.f32 %v156, %v993
    %v995 = vpop.f32.mrb[0].mxu0
    %996 = vmatprep.mubr.f32.mxu0 0.0
    %997 = vmatmul.mubr.f32.gmra.mrb[0].mxu0 %v391
    %v998 = vpop.f32.mrb[0].mxu0
    %v999 = vadd.f32 %v156, %v998
    %v1000 = vpop.f32.mrb[0].mxu0
    %1001 = vmatprep.mubr.f32.mxu0 0.0
    %1002 = vmatmul.mubr.f32.gmra.mrb[0].mxu0 %v394
    %v1003 = vpop.f32.mrb[0].mxu0
    %v1004 = vadd.f32 %v156, %v1003
    %v1005 = vpop.f32.mrb[0].mxu0
    %1006 = vmatprep.mubr.f32.mxu0 0.0
    %1007 = vmatmul.mubr.f32.gmra.mrb[0].mxu0 %v397
    %v1008 = vpop.f32.mrb[0].mxu0
    %v1009 = vadd.f32 %v156, %v1008
    %v1010 = vpop.f32.mrb[0].mxu0
    %1011 = vmatprep.mubr.f32.mxu0 0.0
    %1012 = vmatmul.mubr.f32.gmra.mrb[0].mxu0 %v400
    %v1013 = vpop.f32.mrb[0].mxu0
    %v1014 = vadd.f32 %v156, %v1013
    %v1015 = vpop.f32.mrb[0].mxu0
    %1016 = vmatprep.mubr.f32.mxu0 0.0
    %1017 = vmatmul.mubr.f32.gmra.mrb[0].mxu0 %v403
    %v1018 = vpop.f32.mrb[0].mxu0
    %v1019 = vadd.f32 %v156, %v1018
    %v1020 = vpop.f32.mrb[0].mxu0
    %1021 = vmatprep.mubr.f32.mxu0 0.0
    %1022 = vmatmul.mubr.f32.gmra.mrb[0].mxu0 %v406
    %v1023 = vpop.f32.mrb[0].mxu0
    %v1024 = vadd.f32 %v156, %v1023
    %v1025 = vpop.f32.mrb[0].mxu0
    %1026 = vmatprep.mubr.f32.mxu0 0.0
    %1027 = vmatmul.mubr.f32.gmra.mrb[0].mxu0 %v409
    %v1028 = vpop.f32.mrb[0].mxu0
    %v1029 = vadd.f32 %v156, %v1028
    %v1030 = vpop.f32.mrb[0].mxu0
    %1031 = vmatprep.mubr.f32.mxu0 0.0
    %1032 = vmatmul.mubr.f32.gmra.mrb[0].mxu0 %v412
    %v1033 = vpop.f32.mrb[0].mxu0
    %v1034 = vadd.f32 %v156, %v1033
    %v1035 = vpop.f32.mrb[0].mxu0
    %1036 = vmatprep.mubr.f32.mxu0 0.0
    %1037 = vmatmul.mubr.f32.gmra.mrb[0].mxu0 %v415
    %v1038 = vpop.f32.mrb[0].mxu0
    %v1039 = vadd.f32 %v156, %v1038
    %v1040 = vpop.f32.mrb[0].mxu0
    %1041 = vmatprep.mubr.f32.mxu0 0.0
    %1042 = vmatmul.mubr.f32.gmra.mrb[0].mxu0 %v418
    %v1043 = vpop.f32.mrb[0].mxu0
    %v1044 = vadd.f32 %v156, %v1043
    %v1045 = vpop.f32.mrb[0].mxu0
    %1046 = vmatprep.mubr.f32.mxu0 0.0
    %1047 = vmatmul.mubr.f32.gmra.mrb[0].mxu0 %v421
    %v1048 = vpop.f32.mrb[0].mxu0
    %v1049 = vadd.f32 %v156, %v1048
    %v1050 = vpop.f32.mrb[0].mxu0
    %1051 = vmatprep.mubr.f32.mxu0 0.0
    %1052 = vmatmul.mubr.f32.gmra.mrb[0].mxu0 %v424
    %v1053 = vpop.f32.mrb[0].mxu0
    %v1054 = vadd.f32 %v156, %v1053
    %v1055 = vpop.f32.mrb[0].mxu0
    %1056 = vmatprep.mubr.f32.mxu0 0.0
    %1057 = vmatmul.mubr.f32.gmra.mrb[0].mxu0 %v427
    %v1058 = vpop.f32.mrb[0].mxu0
    %v1059 = vadd.f32 %v156, %v1058
    %v1060 = vpop.f32.mrb[0].mxu0
    %1061 = vmatprep.mubr.f32.mxu0 0.0
    %1062 = vmatmul.mubr.f32.gmra.mrb[0].mxu0 %v430
    %v1063 = vpop.f32.mrb[0].mxu0
    %v1064 = vadd.f32 %v156, %v1063
    %v1065 = vpop.f32.mrb[0].mxu0
    %1066 = vmatprep.mubr.f32.mxu0 0.0
    %1067 = vmatmul.mubr.f32.gmra.mrb[0].mxu0 %v433
    %v1068 = vpop.f32.mrb[0].mxu0
    %v1069 = vadd.f32 %v156, %v1068
    %v1070 = vpop.f32.mrb[0].mxu0
    %1071 = vmatprep.mubr.f32.mxu0 0.0
    %1072 = vmatmul.mubr.f32.gmra.mrb[0].mxu0 %v436
    %v1073 = vpop.f32.mrb[0].mxu0
    %v1074 = vadd.f32 %v156, %v1073
    %v1075 = vpop.f32.mrb[0].mxu0
    %1076 = vmatprep.mubr.f32.mxu0 0.0
    %1077 = vmatmul.mubr.f32.gmra.mrb[0].mxu0 %v439
    %v1078 = vpop.f32.mrb[0].mxu0
    %v1079 = vadd.f32 %v156, %v1078
    %v1080 = vpop.f32.mrb[0].mxu0
    %1081 = vmatprep.mubr.f32.mxu0 0.0
    %1082 = vmatmul.mubr.f32.gmra.mrb[0].mxu0 %v442
    %v1083 = vpop.f32.mrb[0].mxu0
    %v1084 = vadd.f32 %v156, %v1083
    %v1085 = vpop.f32.mrb[0].mxu0
    %1086 = vmatprep.mubr.f32.mxu0 0.0
    %1087 = vmatmul.mubr.f32.gmra.mrb[0].mxu0 %v445
    %v1088 = vpop.f32.mrb[0].mxu0
    %v1089 = vadd.f32 %v156, %v1088
    %v1090 = vpop.f32.mrb[0].mxu0
    %1091 = vmatprep.mubr.f32.mxu0 0.0
    %1092 = vmatmul.mubr.f32.gmra.mrb[0].mxu0 %v448
    %v1093 = vpop.f32.mrb[0].mxu0
    %v1094 = vadd.f32 %v156, %v1093
    %v1095 = vpop.f32.mrb[0].mxu0
    %1096 = vmatprep.mubr.f32.mxu0 0.0
    %1097 = vmatmul.mubr.f32.gmra.mrb[0].mxu0 %v451
    %v1098 = vpop.f32.mrb[0].mxu0
    %v1099 = vadd.f32 %v156, %v1098
    %v1100 = vpop.f32.mrb[0].mxu0
    %1101 = vmatprep.mubr.f32.mxu0 0.0
    %1102 = vmatmul.mubr.f32.gmra.mrb[0].mxu0 %v454
    %v1103 = vpop.f32.mrb[0].mxu0
    %v1104 = vadd.f32 %v156, %v1103
    %v1105 = vpop.f32.mrb[0].mxu0
    %1106 = vmatprep.mubr.f32.mxu0 0.0
    %1107 = vmatmul.mubr.f32.gmra.mrb[0].mxu0 %v457
    %v1108 = vpop.f32.mrb[0].mxu0
    %v1109 = vadd.f32 %v156, %v1108
    %v1110 = vpop.f32.mrb[0].mxu0
    %1111 = vmatprep.mubr.f32.mxu0 0.0
    %1112 = vmatmul.mubr.f32.gmra.mrb[0].mxu0 %v460
    %v1113 = vpop.f32.mrb[0].mxu0
    %v1114 = vadd.f32 %v156, %v1113
    %v1115 = vpop.f32.mrb[0].mxu0
    %1116 = vmatprep.mubr.f32.mxu0 0.0
    %1117 = vmatmul.mubr.f32.gmra.mrb[0].mxu0 %v463
    %v1118 = vpop.f32.mrb[0].mxu0
    %v1119 = vadd.f32 %v156, %v1118
    %v1120 = vpop.f32.mrb[0].mxu0
    %1121 = vmatprep.mubr.f32.mxu0 0.0
    %1122 = vmatmul.mubr.f32.gmra.mrb[0].mxu0 %v466
    %v1123 = vpop.f32.mrb[0].mxu0
    %v1124 = vadd.f32 %v156, %v1123
    %v1125 = vpop.f32.mrb[0].mxu0
    %1126 = vmatprep.mubr.f32.mxu0 0.0
    %1127 = vmatmul.mubr.f32.gmra.mrb[0].mxu0 %v469
    %v1128 = vpop.f32.mrb[0].mxu0
    %v1129 = vadd.f32 %v156, %v1128
    %v1130 = vpop.f32.mrb[0].mxu0
    %1131 = vmatprep.mubr.f32.mxu0 0.0
    %1132 = vmatmul.mubr.f32.gmra.mrb[0].mxu0 %v472
    %v1133 = vpop.f32.mrb[0].mxu0
    %v1134 = vadd.f32 %v156, %v1133
    %v1135 = vpop.f32.mrb[0].mxu0
    %1136 = vmatprep.mubr.f32.mxu0 0.0
    %1137 = vmatmul.mubr.f32.gmra.mrb[0].mxu0 %v475
    %v1138 = vpop.f32.mrb[0].mxu0
    %v1139 = vadd.f32 %v156, %v1138
    %v1140 = vpop.f32.mrb[0].mxu0
    %1141 = vmatprep.mubr.f32.mxu0 0.0
    %1142 = vmatmul.mubr.f32.gmra.mrb[0].mxu0 %v478
    %v1143 = vpop.f32.mrb[0].mxu0
    %v1144 = vadd.f32 %v156, %v1143
    %v1145 = vpop.f32.mrb[0].mxu0
    %1146 = vmatprep.mubr.f32.mxu0 0.0
    %1147 = vmatmul.mubr.f32.gmra.mrb[0].mxu0 %v481
    %v1148 = vpop.f32.mrb[0].mxu0
    %v1149 = vadd.f32 %v156, %v1148
    %v1150 = vpop.f32.mrb[0].mxu0
    %1151 = vmatprep.mubr.f32.mxu0 0.0
    %1152 = vmatmul.mubr.f32.gmra.mrb[0].mxu0 %v484
    %v1153 = vpop.f32.mrb[0].mxu0
    %v1154 = vadd.f32 %v156, %v1153
    %v1155 = vpop.f32.mrb[0].mxu0
    %1156 = vmatprep.mubr.f32.mxu0 0.0
    %1157 = vmatmul.mubr.f32.gmra.mrb[0].mxu0 %v487
    %v1158 = vpop.f32.mrb[0].mxu0
    %v1159 = vadd.f32 %v156, %v1158
    %v1160 = vpop.f32.mrb[0].mxu0
    %1161 = vmatprep.mubr.f32.mxu0 0.0
    %1162 = vmatmul.mubr.f32.gmra.mrb[0].mxu0 %v490
    %v1163 = vpop.f32.mrb[0].mxu0
    %v1164 = vadd.f32 %v156, %v1163
    %v1165 = vpop.f32.mrb[0].mxu0
    %1166 = vmatprep.mubr.f32.mxu0 0.0
    %1167 = vmatmul.mubr.f32.gmra.mrb[0].mxu0 %v493
    %v1168 = vpop.f32.mrb[0].mxu0
    %v1169 = vadd.f32 %v156, %v1168
    %v1170 = vpop.f32.mrb[0].mxu0
    %1171 = vmatprep.mubr.f32.mxu0 0.0
    %1172 = vmatmul.mubr.f32.gmra.mrb[0].mxu0 %v496
    %v1173 = vpop.f32.mrb[0].mxu0
    %v1174 = vadd.f32 %v156, %v1173
    %v1175 = vpop.f32.mrb[0].mxu0
    %1176 = vmatprep.mubr.f32.mxu0 0.0
    %1177 = vmatmul.mubr.f32.gmra.mrb[0].mxu0 %v499
    %v1178 = vpop.f32.mrb[0].mxu0
    %v1179 = vadd.f32 %v156, %v1178
    %v1180 = vpop.f32.mrb[0].mxu0
    %1181 = vmatprep.mubr.f32.mxu0 0.0
    %1182 = vmatmul.mubr.f32.gmra.mrb[0].mxu0 %v502
    %v1183 = vpop.f32.mrb[0].mxu0
    %v1184 = vadd.f32 %v156, %v1183
    %v1185 = vpop.f32.mrb[0].mxu0
    %1186 = vmatprep.mubr.f32.mxu0 0.0
    %1187 = vmatmul.mubr.f32.gmra.mrb[0].mxu0 %v505
    %v1188 = vpop.f32.mrb[0].mxu0
    %v1189 = vadd.f32 %v156, %v1188
    %v1190 = vpop.f32.mrb[0].mxu0
    %1191 = vmatprep.mubr.f32.mxu0 0.0
    %1192 = vmatmul.mubr.f32.gmra.mrb[0].mxu0 %v508
    %v1193 = vpop.f32.mrb[0].mxu0
    %v1194 = vadd.f32 %v156, %v1193
    %v1195 = vpop.f32.mrb[0].mxu0
    %1196 = vmatprep.mubr.f32.mxu0 0.0
    %1197 = vmatmul.mubr.f32.gmra.mrb[0].mxu0 %v511
    %v1198 = vpop.f32.mrb[0].mxu0
    %v1199 = vadd.f32 %v156, %v1198
    %v1200 = vpop.f32.mrb[0].mxu0
    %1201 = vmatprep.mubr.f32.mxu0 0.0
    %1202 = vmatmul.mubr.f32.gmra.mrb[0].mxu0 %v514
    %v1203 = vpop.f32.mrb[0].mxu0
    %v1204 = vadd.f32 %v156, %v1203
    %v1205 = vpop.f32.mrb[0].mxu0
    %1206 = vmatprep.mubr.f32.mxu0 0.0
    %1207 = vmatmul.mubr.f32.gmra.mrb[0].mxu0 %v517
    %v1208 = vpop.f32.mrb[0].mxu0
    %v1209 = vadd.f32 %v156, %v1208
    %v1210 = vpop.f32.mrb[0].mxu0
    %1211 = vmatprep.mubr.f32.mxu0 0.0
    %1212 = vmatmul.mubr.f32.gmra.mrb[0].mxu0 %v520
    %v1213 = vpop.f32.mrb[0].mxu0
    %v1214 = vadd.f32 %v156, %v1213
    %v1215 = vpop.f32.mrb[0].mxu0
    %1216 = vmatprep.mubr.f32.mxu0 0.0
    %1217 = vmatmul.mubr.f32.gmra.mrb[0].mxu0 %v523
    %v1218 = vpop.f32.mrb[0].mxu0
    %v1219 = vadd.f32 %v156, %v1218
    %v1220 = vpop.f32.mrb[0].mxu0
    %1221 = vmatprep.mubr.f32.mxu0 0.0
    %1222 = vmatmul.mubr.f32.gmra.mrb[0].mxu0 %v526
    %v1223 = vpop.f32.mrb[0].mxu0
    %v1224 = vadd.f32 %v156, %v1223
    %v1225 = vpop.f32.mrb[0].mxu0
    %1226 = vmatprep.mubr.f32.mxu0 0.0
    %1227 = vmatmul.mubr.f32.gmra.mrb[0].mxu0 %v529
    %v1228 = vpop.f32.mrb[0].mxu0
    %v1229 = vadd.f32 %v156, %v1228
    %v1230 = vpop.f32.mrb[0].mxu0
    %1231 = vmatprep.mubr.f32.mxu0 0.0
    %1232 = vmatmul.mubr.f32.gmra.mrb[0].mxu0 %v532
    %v1233 = vpop.f32.mrb[0].mxu0
    %v1234 = vadd.f32 %v156, %v1233
    %v1235 = vpop.f32.mrb[0].mxu0
    %1236 = vmatprep.mubr.f32.mxu0 0.0
    %1237 = vmatmul.mubr.f32.gmra.mrb[0].mxu0 %v535
    %v1238 = vpop.f32.mrb[0].mxu0
    %v1239 = vadd.f32 %v156, %v1238
    %v1240 = vpop.f32.mrb[0].mxu0
    %1241 = vmatprep.mubr.f32.mxu0 0.0
    %1242 = vmatmul.mubr.f32.gmra.mrb[0].mxu0 %v538
    %v1243 = vpop.f32.mrb[0].mxu0
    %v1244 = vadd.f32 %v156, %v1243
    %v1245 = vpop.f32.mrb[0].mxu0
    %1246 = vmatprep.mubr.f32.mxu0 0.0
    %1247 = vmatmul.mubr.f32.gmra.mrb[0].mxu0 %v541
    %v1248 = vpop.f32.mrb[0].mxu0
    %v1249 = vadd.f32 %v156, %v1248
    %v1250 = vpop.f32.mrb[0].mxu0
    %1251 = vdwg.mxu0
    %v1252 = vmax.f32 %v614, 0.0
    %v1253 = vmax.f32 %v619, 0.0
    %v1254 = vmax.f32 %v624, 0.0
    %v1255 = vmax.f32 %v629, 0.0
    %v1256 = vmax.f32 %v634, 0.0
    %v1257 = vmax.f32 %v639, 0.0
    %v1258 = vmax.f32 %v644, 0.0
    %v1259 = vmax.f32 %v649, 0.0
    %v1260 = vmax.f32 %v654, 0.0
    %v1261 = vmax.f32 %v659, 0.0
    %v1262 = vmax.f32 %v664, 0.0
    %v1263 = vmax.f32 %v669, 0.0
    %v1264 = vmax.f32 %v674, 0.0
    %v1265 = vmax.f32 %v679, 0.0
    %v1266 = vmax.f32 %v684, 0.0
    %v1267 = vmax.f32 %v689, 0.0
    %v1268 = vmax.f32 %v694, 0.0
    %v1269 = vmax.f32 %v699, 0.0
    %v1270 = vmax.f32 %v704, 0.0
    %v1271 = vmax.f32 %v709, 0.0
    %v1272 = vmax.f32 %v714, 0.0
    %v1273 = vmax.f32 %v719, 0.0
    %v1274 = vmax.f32 %v724, 0.0
    %v1275 = vmax.f32 %v729, 0.0
    %v1276 = vmax.f32 %v734, 0.0
    %v1277 = vmax.f32 %v739, 0.0
    %v1278 = vmax.f32 %v744, 0.0
    %v1279 = vmax.f32 %v749, 0.0
    %v1280 = vmax.f32 %v754, 0.0
    %v1281 = vmax.f32 %v759, 0.0
    %v1282 = vmax.f32 %v764, 0.0
    %v1283 = vmax.f32 %v769, 0.0
    %v1284 = vmax.f32 %v774, 0.0
    %v1285 = vmax.f32 %v779, 0.0
    %v1286 = vmax.f32 %v784, 0.0
    %v1287 = vmax.f32 %v789, 0.0
    %v1288 = vmax.f32 %v794, 0.0
    %v1289 = vmax.f32 %v799, 0.0
    %v1290 = vmax.f32 %v804, 0.0
    %v1291 = vmax.f32 %v809, 0.0
    %v1292 = vmax.f32 %v814, 0.0
    %v1293 = vmax.f32 %v819, 0.0
    %v1294 = vmax.f32 %v824, 0.0
    %v1295 = vmax.f32 %v829, 0.0
    %v1296 = vmax.f32 %v834, 0.0
    %v1297 = vmax.f32 %v839, 0.0
    %v1298 = vmax.f32 %v844, 0.0
    %v1299 = vmax.f32 %v849, 0.0
    %v1300 = vmax.f32 %v854, 0.0
    %v1301 = vmax.f32 %v859, 0.0
    %v1302 = vmax.f32 %v864, 0.0
    %v1303 = vmax.f32 %v869, 0.0
    %v1304 = vmax.f32 %v874, 0.0
    %v1305 = vmax.f32 %v879, 0.0
    %v1306 = vmax.f32 %v884, 0.0
    %v1307 = vmax.f32 %v889, 0.0
    %v1308 = vmax.f32 %v894, 0.0
    %v1309 = vmax.f32 %v899, 0.0
    %v1310 = vmax.f32 %v904, 0.0
    %v1311 = vmax.f32 %v909, 0.0
    %v1312 = vmax.f32 %v914, 0.0
    %v1313 = vmax.f32 %v919, 0.0
    %v1314 = vmax.f32 %v924, 0.0
    %v1315 = vmax.f32 %v929, 0.0
    %v1316 = vmax.f32 %v934, 0.0
    %v1317 = vmax.f32 %v939, 0.0
    %v1318 = vmax.f32 %v944, 0.0
    %v1319 = vmax.f32 %v949, 0.0
    %v1320 = vmax.f32 %v954, 0.0
    %v1321 = vmax.f32 %v959, 0.0
    %v1322 = vmax.f32 %v964, 0.0
    %v1323 = vmax.f32 %v969, 0.0
    %v1324 = vmax.f32 %v974, 0.0
    %v1325 = vmax.f32 %v979, 0.0
    %v1326 = vmax.f32 %v984, 0.0
    %v1327 = vmax.f32 %v989, 0.0
    %v1328 = vmax.f32 %v994, 0.0
    %v1329 = vmax.f32 %v999, 0.0
    %v1330 = vmax.f32 %v1004, 0.0
    %v1331 = vmax.f32 %v1009, 0.0
    %v1332 = vmax.f32 %v1014, 0.0
    %v1333 = vmax.f32 %v1019, 0.0
    %v1334 = vmax.f32 %v1024, 0.0
    %v1335 = vmax.f32 %v1029, 0.0
    %v1336 = vmax.f32 %v1034, 0.0
    %v1337 = vmax.f32 %v1039, 0.0
    %v1338 = vmax.f32 %v1044, 0.0
    %v1339 = vmax.f32 %v1049, 0.0
    %v1340 = vmax.f32 %v1054, 0.0
    %v1341 = vmax.f32 %v1059, 0.0
    %v1342 = vmax.f32 %v1064, 0.0
    %v1343 = vmax.f32 %v1069, 0.0
    %v1344 = vmax.f32 %v1074, 0.0
    %v1345 = vmax.f32 %v1079, 0.0
    %v1346 = vmax.f32 %v1084, 0.0
    %v1347 = vmax.f32 %v1089, 0.0
    %v1348 = vmax.f32 %v1094, 0.0
    %v1349 = vmax.f32 %v1099, 0.0
    %v1350 = vmax.f32 %v1104, 0.0
    %v1351 = vmax.f32 %v1109, 0.0
    %v1352 = vmax.f32 %v1114, 0.0
    %v1353 = vmax.f32 %v1119, 0.0
    %v1354 = vmax.f32 %v1124, 0.0
    %v1355 = vmax.f32 %v1129, 0.0
    %v1356 = vmax.f32 %v1134, 0.0
    %v1357 = vmax.f32 %v1139, 0.0
    %v1358 = vmax.f32 %v1144, 0.0
    %v1359 = vmax.f32 %v1149, 0.0
    %v1360 = vmax.f32 %v1154, 0.0
    %v1361 = vmax.f32 %v1159, 0.0
    %v1362 = vmax.f32 %v1164, 0.0
    %v1363 = vmax.f32 %v1169, 0.0
    %v1364 = vmax.f32 %v1174, 0.0
    %v1365 = vmax.f32 %v1179, 0.0
    %v1366 = vmax.f32 %v1184, 0.0
    %v1367 = vmax.f32 %v1189, 0.0
    %v1368 = vmax.f32 %v1194, 0.0
    %v1369 = vmax.f32 %v1199, 0.0
    %v1370 = vmax.f32 %v1204, 0.0
    %v1371 = vmax.f32 %v1209, 0.0
    %v1372 = vmax.f32 %v1214, 0.0
    %v1373 = vmax.f32 %v1219, 0.0
    %v1374 = vmax.f32 %v1224, 0.0
    %v1375 = vmax.f32 %v1229, 0.0
    %v1376 = vmax.f32 %v1234, 0.0
    %v1377 = vmax.f32 %v1239, 0.0
    %v1378 = vmax.f32 %v1244, 0.0
    %v1379 = vmax.f32 %v1249, 0.0
    %v1380 = vld [vmem:[%s3] sm:$0xff]
    %v1381 = vld [vmem:[%s3 + $0x8] sm:$0xff]
    %v1384 = vcombine.high %v1380, %v1380
    %v1386 = vunpack.c.l.s4 1983009808
    %v1387 = vunpack.c.0.s8 %v1386
    %v1388 = vlaneseq
    %v1389 = vshrl.u32 %v1388, 7
    %v1390 = vsub.s32 %v1387, %v1389
    %v1391 = vrot.slane %v1380, %v1390
    %v1393 = vunpack.c.l.s4 1983009808
    %v1394 = vunpack.c.0.s8 %v1393
    %v1395 = vlaneseq
    %v1396 = vshrl.u32 %v1395, 7
    %v1397 = vsub.s32 %v1394, %v1396
    %v1398 = vrot.slane %v1384, %v1397
    %v1399 = vcombine.high %v1391, %v1391
    %v1400 = vcombine.high %v1398, %v1398
    %v1401 = vcombine.high %v1381, %v1381
    %v1403 = vunpack.c.l.s4 1983009808
    %v1404 = vunpack.c.0.s8 %v1403
    %v1405 = vlaneseq
    %v1406 = vshrl.u32 %v1405, 7
    %v1407 = vsub.s32 %v1404, %v1406
    %v1408 = vrot.slane %v1381, %v1407
    %v1410 = vunpack.c.l.s4 1983009808
    %v1411 = vunpack.c.0.s8 %v1410
    %v1412 = vlaneseq
    %v1413 = vshrl.u32 %v1412, 7
    %v1414 = vsub.s32 %v1411, %v1413
    %v1415 = vrot.slane %v1401, %v1414
    %v1416 = vcombine.high %v1408, %v1408
    %v1417 = vcombine.high %v1415, %v1415
    %1426 = vmatprep.subr.mxu0 0.0
    %1427 = vmatpush1.msra.mxu0 %v1252
    %1428 = vmatprep.subr.mxu0 0.0
    %1429 = vmatpush1.msra.mxu0 %v1253
    %1430 = vmatprep.subr.mxu0 0.0
    %1431 = vmatpush1.msra.mxu0 %v1254
    %1432 = vmatprep.subr.mxu0 0.0
    %1433 = vmatpush1.msra.mxu0 %v1255
    %1434 = vmatprep.subr.mxu0 0.0
    %1435 = vmatpush1.msra.mxu0 %v1256
    %1436 = vmatprep.subr.mxu0 0.0
    %1437 = vmatpush1.msra.mxu0 %v1257
    %1438 = vmatprep.subr.mxu0 0.0
    %1439 = vmatpush1.msra.mxu0 %v1258
    %1440 = vmatprep.subr.mxu0 0.0
    %1441 = vmatpush1.msra.mxu0 %v1259
    %1442 = vmatprep.subr.mxu0 0.0
    %1443 = vmatpush1.msra.mxu0 %v1260
    %1444 = vmatprep.subr.mxu0 0.0
    %1445 = vmatpush1.msra.mxu0 %v1261
    %1446 = vmatprep.subr.mxu0 0.0
    %1447 = vmatpush1.msra.mxu0 %v1262
    %1448 = vmatprep.subr.mxu0 0.0
    %1449 = vmatpush1.msra.mxu0 %v1263
    %1450 = vmatprep.subr.mxu0 0.0
    %1451 = vmatpush1.msra.mxu0 %v1264
    %1452 = vmatprep.subr.mxu0 0.0
    %1453 = vmatpush1.msra.mxu0 %v1265
    %1454 = vmatprep.subr.mxu0 0.0
    %1455 = vmatpush1.msra.mxu0 %v1266
    %1456 = vmatprep.subr.mxu0 0.0
    %1457 = vmatpush1.msra.mxu0 %v1267
    %1458 = vmatprep.subr.mxu0 0.0
    %1459 = vmatpush1.msra.mxu0 %v1268
    %1460 = vmatprep.subr.mxu0 0.0
    %1461 = vmatpush1.msra.mxu0 %v1269
    %1462 = vmatprep.subr.mxu0 0.0
    %1463 = vmatpush1.msra.mxu0 %v1270
    %1464 = vmatprep.subr.mxu0 0.0
    %1465 = vmatpush1.msra.mxu0 %v1271
    %1466 = vmatprep.subr.mxu0 0.0
    %1467 = vmatpush1.msra.mxu0 %v1272
    %1468 = vmatprep.subr.mxu0 0.0
    %1469 = vmatpush1.msra.mxu0 %v1273
    %1470 = vmatprep.subr.mxu0 0.0
    %1471 = vmatpush1.msra.mxu0 %v1274
    %1472 = vmatprep.subr.mxu0 0.0
    %1473 = vmatpush1.msra.mxu0 %v1275
    %1474 = vmatprep.subr.mxu0 0.0
    %1475 = vmatpush1.msra.mxu0 %v1276
    %1476 = vmatprep.subr.mxu0 0.0
    %1477 = vmatpush1.msra.mxu0 %v1277
    %1478 = vmatprep.subr.mxu0 0.0
    %1479 = vmatpush1.msra.mxu0 %v1278
    %1480 = vmatprep.subr.mxu0 0.0
    %1481 = vmatpush1.msra.mxu0 %v1279
    %1482 = vmatprep.subr.mxu0 0.0
    %1483 = vmatpush1.msra.mxu0 %v1280
    %1484 = vmatprep.subr.mxu0 0.0
    %1485 = vmatpush1.msra.mxu0 %v1281
    %1486 = vmatprep.subr.mxu0 0.0
    %1487 = vmatpush1.msra.mxu0 %v1282
    %1488 = vmatprep.subr.mxu0 0.0
    %1489 = vmatpush1.msra.mxu0 %v1283
    %1490 = vmatprep.mubr.f32.mxu0 %v1399
    %1491 = vmatmul.mubr.f32.gmra.mrb[0].mxu0 %v1391
    %v1492 = vpop.f32.mrb[0].mxu0
    %v1493 = vadd.f32 0.0, %v1492
    %v1494 = vpop.f32.mrb[0].mxu0
    %1495 = vdwg.mxu0
    %1496 = vmatprep.subr.mxu0 0.0
    %1497 = vmatpush1.msra.mxu0 %v1284
    %1498 = vmatprep.subr.mxu0 0.0
    %1499 = vmatpush1.msra.mxu0 %v1285
    %1500 = vmatprep.subr.mxu0 0.0
    %1501 = vmatpush1.msra.mxu0 %v1286
    %1502 = vmatprep.subr.mxu0 0.0
    %1503 = vmatpush1.msra.mxu0 %v1287
    %1504 = vmatprep.subr.mxu0 0.0
    %1505 = vmatpush1.msra.mxu0 %v1288
    %1506 = vmatprep.subr.mxu0 0.0
    %1507 = vmatpush1.msra.mxu0 %v1289
    %1508 = vmatprep.subr.mxu0 0.0
    %1509 = vmatpush1.msra.mxu0 %v1290
    %1510 = vmatprep.subr.mxu0 0.0
    %1511 = vmatpush1.msra.mxu0 %v1291
    %1512 = vmatprep.subr.mxu0 0.0
    %1513 = vmatpush1.msra.mxu0 %v1292
    %1514 = vmatprep.subr.mxu0 0.0
    %1515 = vmatpush1.msra.mxu0 %v1293
    %1516 = vmatprep.subr.mxu0 0.0
    %1517 = vmatpush1.msra.mxu0 %v1294
    %1518 = vmatprep.subr.mxu0 0.0
    %1519 = vmatpush1.msra.mxu0 %v1295
    %1520 = vmatprep.subr.mxu0 0.0
    %1521 = vmatpush1.msra.mxu0 %v1296
    %1522 = vmatprep.subr.mxu0 0.0
    %1523 = vmatpush1.msra.mxu0 %v1297
    %1524 = vmatprep.subr.mxu0 0.0
    %1525 = vmatpush1.msra.mxu0 %v1298
    %1526 = vmatprep.subr.mxu0 0.0
    %1527 = vmatpush1.msra.mxu0 %v1299
    %1528 = vmatprep.subr.mxu0 0.0
    %1529 = vmatpush1.msra.mxu0 %v1300
    %1530 = vmatprep.subr.mxu0 0.0
    %1531 = vmatpush1.msra.mxu0 %v1301
    %1532 = vmatprep.subr.mxu0 0.0
    %1533 = vmatpush1.msra.mxu0 %v1302
    %1534 = vmatprep.subr.mxu0 0.0
    %1535 = vmatpush1.msra.mxu0 %v1303
    %1536 = vmatprep.subr.mxu0 0.0
    %1537 = vmatpush1.msra.mxu0 %v1304
    %1538 = vmatprep.subr.mxu0 0.0
    %1539 = vmatpush1.msra.mxu0 %v1305
    %1540 = vmatprep.subr.mxu0 0.0
    %1541 = vmatpush1.msra.mxu0 %v1306
    %1542 = vmatprep.subr.mxu0 0.0
    %1543 = vmatpush1.msra.mxu0 %v1307
    %1544 = vmatprep.subr.mxu0 0.0
    %1545 = vmatpush1.msra.mxu0 %v1308
    %1546 = vmatprep.subr.mxu0 0.0
    %1547 = vmatpush1.msra.mxu0 %v1309
    %1548 = vmatprep.subr.mxu0 0.0
    %1549 = vmatpush1.msra.mxu0 %v1310
    %1550 = vmatprep.subr.mxu0 0.0
    %1551 = vmatpush1.msra.mxu0 %v1311
    %1552 = vmatprep.subr.mxu0 0.0
    %1553 = vmatpush1.msra.mxu0 %v1312
    %1554 = vmatprep.subr.mxu0 0.0
    %1555 = vmatpush1.msra.mxu0 %v1313
    %1556 = vmatprep.subr.mxu0 0.0
    %1557 = vmatpush1.msra.mxu0 %v1314
    %1558 = vmatprep.subr.mxu0 0.0
    %1559 = vmatpush1.msra.mxu0 %v1315
    %1560 = vmatprep.mubr.f32.mxu0 %v1400
    %1561 = vmatmul.mubr.f32.gmra.mrb[0].mxu0 %v1398
    %v1562 = vpop.f32.mrb[0].mxu0
    %v1563 = vadd.f32 %v1493, %v1562
    %v1564 = vpop.f32.mrb[0].mxu0
    %1565 = vdwg.mxu0
    %1566 = vmatprep.subr.mxu0 0.0
    %1567 = vmatpush1.msra.mxu0 %v1316
    %1568 = vmatprep.subr.mxu0 0.0
    %1569 = vmatpush1.msra.mxu0 %v1317
    %1570 = vmatprep.subr.mxu0 0.0
    %1571 = vmatpush1.msra.mxu0 %v1318
    %1572 = vmatprep.subr.mxu0 0.0
    %1573 = vmatpush1.msra.mxu0 %v1319
    %1574 = vmatprep.subr.mxu0 0.0
    %1575 = vmatpush1.msra.mxu0 %v1320
    %1576 = vmatprep.subr.mxu0 0.0
    %1577 = vmatpush1.msra.mxu0 %v1321
    %1578 = vmatprep.subr.mxu0 0.0
    %1579 = vmatpush1.msra.mxu0 %v1322
    %1580 = vmatprep.subr.mxu0 0.0
    %1581 = vmatpush1.msra.mxu0 %v1323
    %1582 = vmatprep.subr.mxu0 0.0
    %1583 = vmatpush1.msra.mxu0 %v1324
    %1584 = vmatprep.subr.mxu0 0.0
    %1585 = vmatpush1.msra.mxu0 %v1325
    %1586 = vmatprep.subr.mxu0 0.0
    %1587 = vmatpush1.msra.mxu0 %v1326
    %1588 = vmatprep.subr.mxu0 0.0
    %1589 = vmatpush1.msra.mxu0 %v1327
    %1590 = vmatprep.subr.mxu0 0.0
    %1591 = vmatpush1.msra.mxu0 %v1328
    %1592 = vmatprep.subr.mxu0 0.0
    %1593 = vmatpush1.msra.mxu0 %v1329
    %1594 = vmatprep.subr.mxu0 0.0
    %1595 = vmatpush1.msra.mxu0 %v1330
    %1596 = vmatprep.subr.mxu0 0.0
    %1597 = vmatpush1.msra.mxu0 %v1331
    %1598 = vmatprep.subr.mxu0 0.0
    %1599 = vmatpush1.msra.mxu0 %v1332
    %1600 = vmatprep.subr.mxu0 0.0
    %1601 = vmatpush1.msra.mxu0 %v1333
    %1602 = vmatprep.subr.mxu0 0.0
    %1603 = vmatpush1.msra.mxu0 %v1334
    %1604 = vmatprep.subr.mxu0 0.0
    %1605 = vmatpush1.msra.mxu0 %v1335
    %1606 = vmatprep.subr.mxu0 0.0
    %1607 = vmatpush1.msra.mxu0 %v1336
    %1608 = vmatprep.subr.mxu0 0.0
    %1609 = vmatpush1.msra.mxu0 %v1337
    %1610 = vmatprep.subr.mxu0 0.0
    %1611 = vmatpush1.msra.mxu0 %v1338
    %1612 = vmatprep.subr.mxu0 0.0
    %1613 = vmatpush1.msra.mxu0 %v1339
    %1614 = vmatprep.subr.mxu0 0.0
    %1615 = vmatpush1.msra.mxu0 %v1340
    %1616 = vmatprep.subr.mxu0 0.0
    %1617 = vmatpush1.msra.mxu0 %v1341
    %1618 = vmatprep.subr.mxu0 0.0
    %1619 = vmatpush1.msra.mxu0 %v1342
    %1620 = vmatprep.subr.mxu0 0.0
    %1621 = vmatpush1.msra.mxu0 %v1343
    %1622 = vmatprep.subr.mxu0 0.0
    %1623 = vmatpush1.msra.mxu0 %v1344
    %1624 = vmatprep.subr.mxu0 0.0
    %1625 = vmatpush1.msra.mxu0 %v1345
    %1626 = vmatprep.subr.mxu0 0.0
    %1627 = vmatpush1.msra.mxu0 %v1346
    %1628 = vmatprep.subr.mxu0 0.0
    %1629 = vmatpush1.msra.mxu0 %v1347
    %1630 = vmatprep.mubr.f32.mxu0 %v1416
    %1631 = vmatmul.mubr.f32.gmra.mrb[0].mxu0 %v1408
    %v1632 = vpop.f32.mrb[0].mxu0
    %v1633 = vadd.f32 %v1563, %v1632
    %v1634 = vpop.f32.mrb[0].mxu0
    %1635 = vdwg.mxu0
    %1636 = vmatprep.subr.mxu0 0.0
    %1637 = vmatpush1.msra.mxu0 %v1348
    %1638 = vmatprep.subr.mxu0 0.0
    %1639 = vmatpush1.msra.mxu0 %v1349
    %1640 = vmatprep.subr.mxu0 0.0
    %1641 = vmatpush1.msra.mxu0 %v1350
    %1642 = vmatprep.subr.mxu0 0.0
    %1643 = vmatpush1.msra.mxu0 %v1351
    %1644 = vmatprep.subr.mxu0 0.0
    %1645 = vmatpush1.msra.mxu0 %v1352
    %1646 = vmatprep.subr.mxu0 0.0
    %1647 = vmatpush1.msra.mxu0 %v1353
    %1648 = vmatprep.subr.mxu0 0.0
    %1649 = vmatpush1.msra.mxu0 %v1354
    %1650 = vmatprep.subr.mxu0 0.0
    %1651 = vmatpush1.msra.mxu0 %v1355
    %1652 = vmatprep.subr.mxu0 0.0
    %1653 = vmatpush1.msra.mxu0 %v1356
    %1654 = vmatprep.subr.mxu0 0.0
    %1655 = vmatpush1.msra.mxu0 %v1357
    %1656 = vmatprep.subr.mxu0 0.0
    %1657 = vmatpush1.msra.mxu0 %v1358
    %1658 = vmatprep.subr.mxu0 0.0
    %1659 = vmatpush1.msra.mxu0 %v1359
    %1660 = vmatprep.subr.mxu0 0.0
    %1661 = vmatpush1.msra.mxu0 %v1360
    %1662 = vmatprep.subr.mxu0 0.0
    %1663 = vmatpush1.msra.mxu0 %v1361
    %1664 = vmatprep.subr.mxu0 0.0
    %1665 = vmatpush1.msra.mxu0 %v1362
    %1666 = vmatprep.subr.mxu0 0.0
    %1667 = vmatpush1.msra.mxu0 %v1363
    %1668 = vmatprep.subr.mxu0 0.0
    %1669 = vmatpush1.msra.mxu0 %v1364
    %1670 = vmatprep.subr.mxu0 0.0
    %1671 = vmatpush1.msra.mxu0 %v1365
    %1672 = vmatprep.subr.mxu0 0.0
    %1673 = vmatpush1.msra.mxu0 %v1366
    %1674 = vmatprep.subr.mxu0 0.0
    %1675 = vmatpush1.msra.mxu0 %v1367
    %1676 = vmatprep.subr.mxu0 0.0
    %1677 = vmatpush1.msra.mxu0 %v1368
    %1678 = vmatprep.subr.mxu0 0.0
    %1679 = vmatpush1.msra.mxu0 %v1369
    %1680 = vmatprep.subr.mxu0 0.0
    %1681 = vmatpush1.msra.mxu0 %v1370
    %1682 = vmatprep.subr.mxu0 0.0
    %1683 = vmatpush1.msra.mxu0 %v1371
    %1684 = vmatprep.subr.mxu0 0.0
    %1685 = vmatpush1.msra.mxu0 %v1372
    %1686 = vmatprep.subr.mxu0 0.0
    %1687 = vmatpush1.msra.mxu0 %v1373
    %1688 = vmatprep.subr.mxu0 0.0
    %1689 = vmatpush1.msra.mxu0 %v1374
    %1690 = vmatprep.subr.mxu0 0.0
    %1691 = vmatpush1.msra.mxu0 %v1375
    %1692 = vmatprep.subr.mxu0 0.0
    %1693 = vmatpush1.msra.mxu0 %v1376
    %1694 = vmatprep.subr.mxu0 0.0
    %1695 = vmatpush1.msra.mxu0 %v1377
    %1696 = vmatprep.subr.mxu0 0.0
    %1697 = vmatpush1.msra.mxu0 %v1378
    %1698 = vmatprep.subr.mxu0 0.0
    %1699 = vmatpush1.msra.mxu0 %v1379
    %1700 = vmatprep.mubr.f32.mxu0 %v1417
    %1701 = vmatmul.mubr.f32.gmra.mrb[0].mxu0 %v1415
    %v1702 = vpop.f32.mrb[0].mxu0
    %v1703 = vadd.f32 %v1633, %v1702
    %v1704 = vpop.f32.mrb[0].mxu0
    %1705 = vdwg.mxu0
    %v1706 = vmul.f32 %v1703, %v1703
    %vm1707 = vcmask 254976
    %v1708 = vsel %vm1707, %v1706, 0.0
    %1709 = vadd.xlane.f32.xlu0 %v1708
    %v1710 = vpop.xlane.xlu0 %1709
    %v1711 = vrot.slane %v1710, 4
    %v1712 = vadd.f32 %v1710, %v1711
    %v1713 = vrot.slane %v1712, 2
    %v1714 = vadd.f32 %v1712, %v1713
    %v1715 = vrot.slane %v1714, 1
    %v1716 = vadd.f32 %v1714, %v1715
    %s1717 = vtos %v1716
    %s1718 = smul.f32 %s1717, 0.015625
    %s1719 = scalar_lea.smem [#allocation2], 0
    %1720 = sst [smem:[%s1719]] %s1718
    // Predicated region
    $region18: #{tpu_custom_call.1} parent=1 // pred_check
      _
    $region19: #{tpu_custom_call.1} parent=1 // pred_check_branch
      %1722 = sbr.rel (0) target = $region21
    $region20: #{tpu_custom_call.1} parent=1 // pred_region
      %s1724 = ssub.s32 16, 16
      %1725 = vsyncadd [#allocation3], %s1724
      %1728 = dma.smem_to_hbm [#allocation2], 16, %s4, [#allocation3]
    $region21: #{tpu_custom_call.1} parent=1 // pred_fallthru
      _
    // Predicated region
    $region22: #{tpu_custom_call.1} parent=1 // pred_check
      _
    $region23: #{tpu_custom_call.1} parent=1 // pred_check_branch
      %1730 = sbr.rel (0) target = $region25
    $region24: #{tpu_custom_call.1} parent=1 // pred_region
      %1731 = dma.done [#allocation3], 16
    $region25: #{tpu_custom_call.1} parent=1 // pred_fallthru
      _
    %1732 = sfence
    %1733 = vsyncpa [#allocation3], 1

</llo_original>
